<compile_context>
chip_gen: v7x
topology: tpu7x:2x2x1
jax: 0.10.0
libtpu: 0.0.40
codegen_flags: <defaults>
</compile_context>

<pallas_src>
import jax
import jax.numpy as jnp
from jax.experimental import pallas as pl
from jax.experimental.pallas import tpu as pltpu

BN_EPS = 1e-5


def make_kernel(batch: int, tile_b: int):
    inv_b = 1.0 / float(batch)

    def kernel(x_ref,
               w1_ref, b1_ref, g1_ref, be1_ref,
               w2_ref, b2_ref, g2_ref, be2_ref,
               w3_ref, b3_ref,
               o_ref,
               s1_ref, q1_ref, s2_ref, q2_ref):
        phase = pl.program_id(0)   # 0: h1 stats, 1: h2 stats, 2: apply + write
        tile = pl.program_id(1)    # batch tile

        # ---- init accumulators on the very first grid step ------------------
        @pl.when(jnp.logical_and(phase == 0, tile == 0))
        def _init():
            s1_ref[...] = jnp.zeros_like(s1_ref)
            q1_ref[...] = jnp.zeros_like(q1_ref)
            s2_ref[...] = jnp.zeros_like(s2_ref)
            q2_ref[...] = jnp.zeros_like(q2_ref)

        # keep the output buffer deterministic in the non-final phases
        # (its HBM block gets rewritten with the real values in phase 2)
        @pl.when(phase != 2)
        def _zero_out():
            o_ref[...] = jnp.zeros_like(o_ref)

        # mask of real (non-padded) batch columns for the BN statistics
        col = tile * tile_b + jax.lax.broadcasted_iota(jnp.int32, (1, tile_b), 1)
        valid = col < batch

        # layer1 + relu : (64, 8) @ (8, tb) -> (64, tb)
        h1 = jnp.dot(w1_ref[...], x_ref[...],
                     preferred_element_type=jnp.float32) + b1_ref[...]
        h1 = jnp.maximum(h1, 0.0)

        @pl.when(phase == 0)
        def _stats1():
            hm = jnp.where(valid, h1, 0.0)
            s1_ref[...] += jnp.sum(hm, axis=-1, keepdims=True)
            q1_ref[...] += jnp.sum(hm * hm, axis=-1, keepdims=True)

        @pl.when(phase >= 1)
        def _apply():
            # batchnorm1 (full-batch stats, fused sum / sum-of-squares form)
            mean1 = s1_ref[...] * inv_b
            var1 = jnp.maximum(q1_ref[...] * inv_b - mean1 * mean1, 0.0)
            sc1 = g1_ref[...] * jax.lax.rsqrt(var1 + BN_EPS)
            sh1 = be1_ref[...] - mean1 * sc1
            h1n = h1 * sc1 + sh1

            # layer2 + relu : (64, 64) @ (64, tb) -> (64, tb)
            h2 = jnp.dot(w2_ref[...], h1n,
                         preferred_element_type=jnp.float32) + b2_ref[...]
            h2 = jnp.maximum(h2, 0.0)

            @pl.when(phase == 1)
            def _stats2():
                hm = jnp.where(valid, h2, 0.0)
                s2_ref[...] += jnp.sum(hm, axis=-1, keepdims=True)
                q2_ref[...] += jnp.sum(hm * hm, axis=-1, keepdims=True)

            @pl.when(phase == 2)
            def _final():
                # batchnorm2
                mean2 = s2_ref[...] * inv_b
                var2 = jnp.maximum(q2_ref[...] * inv_b - mean2 * mean2, 0.0)
                sc2 = g2_ref[...] * jax.lax.rsqrt(var2 + BN_EPS)
                sh2 = be2_ref[...] - mean2 * sc2
                h2n = h2 * sc2 + sh2
                # dropout -> identity (see TODO at top of file)
                # layer3 : (1, 64) @ (64, tb) -> (1, tb)  (lane-dense output row)
                y = jnp.dot(w3_ref[...], h2n,
                            preferred_element_type=jnp.float32) + b3_ref[...]
                o_ref[...] = y.astype(o_ref.dtype)

    return kernel


def binary_classification_forward(x, params, *, tile_b=128):
    """x: (B, 8) float32 (PyTorch layout).  Returns (B, 1) float32."""
    B = x.shape[0]
    n_tiles = pl.cdiv(B, tile_b)
    Bp = n_tiles * tile_b

    # feature-major activations, padded up to a lane multiple
    xt = jnp.zeros((8, Bp), jnp.float32).at[:, :B].set(x.astype(jnp.float32).T)

    const = lambda p, t: (0, 0)
    full = lambda arr: pl.BlockSpec(arr.shape, const)   # whole-array, resident

    args = (xt,
            params["w1"], params["b1"], params["g1"], params["be1"],
            params["w2"], params["b2"], params["g2"], params["be2"],
            params["w3"], params["b3"])

    in_specs = [pl.BlockSpec((8, tile_b), lambda p, t: (0, t))]
    in_specs += [full(a) for a in args[1:]]

    out = pl.pallas_call(
        make_kernel(B, tile_b),
        out_shape=jax.ShapeDtypeStruct((1, Bp), jnp.float32),
        grid_spec=pltpu.PrefetchScalarGridSpec(
            num_scalar_prefetch=0,
            grid=(3, n_tiles),                    # (phase, batch tile)
            in_specs=in_specs,
            out_specs=pl.BlockSpec((1, tile_b), lambda p, t: (0, t)),
            scratch_shapes=[pltpu.VMEM((64, 1), jnp.float32)
                            for _ in range(4)]),  # sum/sumsq for h1 and h2
        compiler_params=pltpu.CompilerParams(
            # tile axis carries the BN accumulation across steps -> arbitrary
            dimension_semantics=("arbitrary", "arbitrary"),
            vmem_limit_bytes=32 * 1024 * 1024),   # safe on v7x (64 MiB phys)
    )(*args)

    return out[:, :B].T                           # back to PyTorch (B, 1)


def init_params(key):
    # Deterministic synthetic init; weights in PyTorch (out_features, in_features)
    # layout, BN affine params as (features, 1) column vectors (feature-major).
    ks = jax.random.split(key, 8)
    return {
        "w1": jax.random.normal(ks[0], (64, 8), jnp.float32) * 0.3,
        "b1": jax.random.normal(ks[1], (64, 1), jnp.float32) * 0.1,
        "g1": 1.0 + 0.05 * jax.random.normal(ks[2], (64, 1), jnp.float32),
        "be1": 0.05 * jax.random.normal(ks[3], (64, 1), jnp.float32),
        "w2": jax.random.normal(ks[4], (64, 64), jnp.float32) * 0.1,
        "b2": jax.random.normal(ks[5], (64, 1), jnp.float32) * 0.1,
        "g2": 1.0 + 0.05 * jax.random.normal(ks[6], (64, 1), jnp.float32),
        "be2": 0.05 * jax.random.normal(ks[7], (64, 1), jnp.float32),
        "w3": jax.random.normal(jax.random.fold_in(key, 99), (1, 64), jnp.float32) * 0.1,
        "b3": jnp.full((1, 1), 0.02, jnp.float32),
    }


def _bn_train_fm(h, gamma, beta):
    # training-mode BatchNorm1d, feature-major (features, batch)
    mean = jnp.mean(h, axis=-1, keepdims=True)
    var = jnp.mean((h - mean) ** 2, axis=-1, keepdims=True)
    return (h - mean) * jax.lax.rsqrt(var + BN_EPS) * gamma + beta


def reference_forward(x, p):
    # Pure-JAX reference of the same semantics, for a sanity check.
    xt = x.T                                               # (8, B)
    h = jnp.maximum(p["w1"] @ xt + p["b1"], 0.0)
    h = _bn_train_fm(h, p["g1"], p["be1"])
    h = jnp.maximum(p["w2"] @ h + p["b2"], 0.0)
    h = _bn_train_fm(h, p["g2"], p["be2"])
    y = p["w3"] @ h + p["b3"]                              # (1, B)
    return y.T                                             # (B, 1)


if __name__ == "__main__":
    key = jax.random.PRNGKey(0)
    kx, kp = jax.random.split(key)
    B = 200  # not a multiple of the 128-lane tile -> exercises the stats mask
    x = jax.random.normal(kx, (B, 8), jnp.float32)
    params = init_params(kp)

    out = jax.block_until_ready(binary_classification_forward(x, params))
    ref = reference_forward(x, params)

    assert out.shape == (B, 1), out.shape
    assert jnp.allclose(out, ref, atol=1e-4, rtol=1e-4), (
        "mismatch vs reference, max abs err = %e"
        % float(jnp.max(jnp.abs(out - ref))))

    print("KERNEL_OK")
</pallas_src>

<mosaic_0001>
module attributes {stable_mosaic.version = 11 : i64} {
  func.func @kernel(%arg0: i32, %arg1: i32, %arg2: memref<8x128xf32, #tpu.memory_space<vmem>>, %arg3: memref<64x8xf32, #tpu.memory_space<vmem>>, %arg4: memref<64x1xf32, #tpu.memory_space<vmem>>, %arg5: memref<64x1xf32, #tpu.memory_space<vmem>>, %arg6: memref<64x1xf32, #tpu.memory_space<vmem>>, %arg7: memref<64x64xf32, #tpu.memory_space<vmem>>, %arg8: memref<64x1xf32, #tpu.memory_space<vmem>>, %arg9: memref<64x1xf32, #tpu.memory_space<vmem>>, %arg10: memref<64x1xf32, #tpu.memory_space<vmem>>, %arg11: memref<1x64xf32, #tpu.memory_space<vmem>>, %arg12: memref<1x1xf32, #tpu.memory_space<vmem>>, %arg13: memref<1x128xf32, #tpu.memory_space<vmem>>, %arg14: memref<64x1xf32, #tpu.memory_space<vmem>>, %arg15: memref<64x1xf32, #tpu.memory_space<vmem>>, %arg16: memref<64x1xf32, #tpu.memory_space<vmem>>, %arg17: memref<64x1xf32, #tpu.memory_space<vmem>>) attributes {dimension_semantics = [#tpu.dimension_semantics<arbitrary>, #tpu.dimension_semantics<arbitrary>], iteration_bounds = array<i64: 3, 2>, scalar_prefetch = 0 : i64, scratch_operands = 4 : i64, tpu.core_type = #tpu.core_type<tc>, window_params = [{transform_indices = @transform_0, window_bounds = array<i64: 8, 128>}, {pipeline_mode = #tpu.pipeline_mode<synchronous>, transform_indices = @transform_1, window_bounds = array<i64: 64, 8>}, {pipeline_mode = #tpu.pipeline_mode<synchronous>, transform_indices = @transform_2, window_bounds = array<i64: 64, 1>}, {pipeline_mode = #tpu.pipeline_mode<synchronous>, transform_indices = @transform_3, window_bounds = array<i64: 64, 1>}, {pipeline_mode = #tpu.pipeline_mode<synchronous>, transform_indices = @transform_4, window_bounds = array<i64: 64, 1>}, {pipeline_mode = #tpu.pipeline_mode<synchronous>, transform_indices = @transform_5, window_bounds = array<i64: 64, 64>}, {pipeline_mode = #tpu.pipeline_mode<synchronous>, transform_indices = @transform_6, window_bounds = array<i64: 64, 1>}, {pipeline_mode = #tpu.pipeline_mode<synchronous>, transform_indices = @transform_7, window_bounds = array<i64: 64, 1>}, {pipeline_mode = #tpu.pipeline_mode<synchronous>, transform_indices = @transform_8, window_bounds = array<i64: 64, 1>}, {pipeline_mode = #tpu.pipeline_mode<synchronous>, transform_indices = @transform_9, window_bounds = array<i64: 1, 64>}, {pipeline_mode = #tpu.pipeline_mode<synchronous>, transform_indices = @transform_10, window_bounds = array<i64: 1, 1>}, {transform_indices = @transform_11, window_bounds = array<i64: 1, 128>}]} {
    %c0_i32 = arith.constant 0 : i32
    %0 = arith.cmpi eq, %arg0, %c0_i32 : i32
    %c0_i32_0 = arith.constant 0 : i32
    %1 = arith.cmpi eq, %arg1, %c0_i32_0 : i32
    %2 = arith.andi %0, %1 : i1
    %3 = arith.extui %2 : i1 to i32
    %c0_i32_1 = arith.constant 0 : i32
    %4 = arith.cmpi ne, %3, %c0_i32_1 : i32
    scf.if %4 {
      %cst_12 = arith.constant 0.000000e+00 : f32
      %28 = vector.broadcast %cst_12 : f32 to vector<64x1xf32>
      %c0_13 = arith.constant 0 : index
      %c0_14 = arith.constant 0 : index
      %29 = vector.load %arg14[%c0_13, %c0_14] : memref<64x1xf32, #tpu.memory_space<vmem>>, vector<64x1xf32>
      tpu.vector_store %arg14[%c0_13, %c0_14], %28 {strides = array<i32>} : memref<64x1xf32, #tpu.memory_space<vmem>>, vector<64x1xf32>,
      %cst_15 = arith.constant 0.000000e+00 : f32
      %30 = vector.broadcast %cst_15 : f32 to vector<64x1xf32>
      %c0_16 = arith.constant 0 : index
      %c0_17 = arith.constant 0 : index
      %31 = vector.load %arg15[%c0_16, %c0_17] : memref<64x1xf32, #tpu.memory_space<vmem>>, vector<64x1xf32>
      tpu.vector_store %arg15[%c0_16, %c0_17], %30 {strides = array<i32>} : memref<64x1xf32, #tpu.memory_space<vmem>>, vector<64x1xf32>,
      %cst_18 = arith.constant 0.000000e+00 : f32
      %32 = vector.broadcast %cst_18 : f32 to vector<64x1xf32>
      %c0_19 = arith.constant 0 : index
      %c0_20 = arith.constant 0 : index
      %33 = vector.load %arg16[%c0_19, %c0_20] : memref<64x1xf32, #tpu.memory_space<vmem>>, vector<64x1xf32>
      tpu.vector_store %arg16[%c0_19, %c0_20], %32 {strides = array<i32>} : memref<64x1xf32, #tpu.memory_space<vmem>>, vector<64x1xf32>,
      %cst_21 = arith.constant 0.000000e+00 : f32
      %34 = vector.broadcast %cst_21 : f32 to vector<64x1xf32>
      %c0_22 = arith.constant 0 : index
      %c0_23 = arith.constant 0 : index
      %35 = vector.load %arg17[%c0_22, %c0_23] : memref<64x1xf32, #tpu.memory_space<vmem>>, vector<64x1xf32>
      tpu.vector_store %arg17[%c0_22, %c0_23], %34 {strides = array<i32>} : memref<64x1xf32, #tpu.memory_space<vmem>>, vector<64x1xf32>,
    } else {
    }
    %c2_i32 = arith.constant 2 : i32
    %5 = arith.cmpi ne, %arg0, %c2_i32 : i32
    %6 = arith.extui %5 : i1 to i32
    %c0_i32_2 = arith.constant 0 : i32
    %7 = arith.cmpi ne, %6, %c0_i32_2 : i32
    scf.if %7 {
      %cst_12 = arith.constant 0.000000e+00 : f32
      %28 = vector.broadcast %cst_12 : f32 to vector<1x128xf32>
      %c0_13 = arith.constant 0 : index
      %c0_14 = arith.constant 0 : index
      %29 = vector.load %arg13[%c0_13, %c0_14] : memref<1x128xf32, #tpu.memory_space<vmem>>, vector<1x128xf32>
      tpu.vector_store %arg13[%c0_13, %c0_14], %28 {strides = array<i32>} : memref<1x128xf32, #tpu.memory_space<vmem>>, vector<1x128xf32>,
    } else {
    }
    %c128_i32 = arith.constant 128 : i32
    %8 = arith.muli %arg1, %c128_i32 : i32
    %9 = tpu.iota {dimensions = array<i32: 1>} : vector<1x128xi32>
    %10 = vector.broadcast %8 : i32 to vector<1x128xi32>
    %11 = arith.addi %10, %9 : vector<1x128xi32>
    %c200_i32 = arith.constant 200 : i32
    %12 = vector.broadcast %c200_i32 : i32 to vector<1x128xi32>
    %13 = arith.cmpi slt, %11, %12 : vector<1x128xi32>
    %c0 = arith.constant 0 : index
    %c0_3 = arith.constant 0 : index
    %14 = vector.load %arg3[%c0, %c0_3] : memref<64x8xf32, #tpu.memory_space<vmem>>, vector<64x8xf32>
    %c0_4 = arith.constant 0 : index
    %c0_5 = arith.constant 0 : index
    %15 = vector.load %arg2[%c0_4, %c0_5] : memref<8x128xf32, #tpu.memory_space<vmem>>, vector<8x128xf32>
    %cst = arith.constant dense<0.000000e+00> : vector<64x128xf32>
    %16 = tpu.matmul %14, %15, %cst {dimension_numbers = #tpu.dot_dimension_numbers<[1], [0], [0], [1], [0, 0, 1, 1], [], []>} : vector<64x8xf32>, vector<8x128xf32>, vector<64x128xf32> -> vector<64x128xf32>
    %c0_6 = arith.constant 0 : index
    %c0_7 = arith.constant 0 : index
    %17 = vector.load %arg4[%c0_6, %c0_7] : memref<64x1xf32, #tpu.memory_space<vmem>>, vector<64x1xf32>
    %18 = vector.broadcast %17 : vector<64x1xf32> to vector<64x128xf32>
    %19 = arith.addf %16, %18 : vector<64x128xf32>
    %cst_8 = arith.constant 0.000000e+00 : f32
    %20 = vector.broadcast %cst_8 : f32 to vector<64x128xf32>
    %21 = arith.maximumf %19, %20 : vector<64x128xf32>
    %c0_i32_9 = arith.constant 0 : i32
    %22 = arith.cmpi eq, %arg0, %c0_i32_9 : i32
    %23 = arith.extui %22 : i1 to i32
    %c0_i32_10 = arith.constant 0 : i32
    %24 = arith.cmpi ne, %23, %c0_i32_10 : i32
    scf.if %24 {
      %cst_12 = arith.constant 0.000000e+00 : f32
      %28 = vector.shape_cast %13 : vector<1x128xi1> to vector<1x128xi1>
      %29 = vector.broadcast %28 : vector<1x128xi1> to vector<64x128xi1>
      %30 = vector.broadcast %cst_12 : f32 to vector<64x128xf32>
      %31 = arith.select %29, %21, %30 : vector<64x128xi1>, vector<64x128xf32>
      %c0_13 = arith.constant 0 : index
      %c0_14 = arith.constant 0 : index
      %32 = vector.load %arg14[%c0_13, %c0_14] : memref<64x1xf32, #tpu.memory_space<vmem>>, vector<64x1xf32>
      %cst_15 = arith.constant dense<0.000000e+00> : vector<64xf32>
      %33 = vector.multi_reduction <add>, %31, %cst_15 [1] : vector<64x128xf32> to vector<64xf32>
      %34 = vector.shape_cast %33 : vector<64xf32> to vector<64x1xf32>
      %35 = arith.addf %32, %34 : vector<64x1xf32>
      %c0_16 = arith.constant 0 : index
      %c0_17 = arith.constant 0 : index
      %36 = vector.load %arg14[%c0_16, %c0_17] : memref<64x1xf32, #tpu.memory_space<vmem>>, vector<64x1xf32>
      tpu.vector_store %arg14[%c0_16, %c0_17], %35 {strides = array<i32>} : memref<64x1xf32, #tpu.memory_space<vmem>>, vector<64x1xf32>,
      %c0_18 = arith.constant 0 : index
      %c0_19 = arith.constant 0 : index
      %37 = vector.load %arg15[%c0_18, %c0_19] : memref<64x1xf32, #tpu.memory_space<vmem>>, vector<64x1xf32>
      %38 = arith.mulf %31, %31 : vector<64x128xf32>
      %cst_20 = arith.constant dense<0.000000e+00> : vector<64xf32>
      %39 = vector.multi_reduction <add>, %38, %cst_20 [1] : vector<64x128xf32> to vector<64xf32>
      %40 = vector.shape_cast %39 : vector<64xf32> to vector<64x1xf32>
      %41 = arith.addf %37, %40 : vector<64x1xf32>
      %c0_21 = arith.constant 0 : index
      %c0_22 = arith.constant 0 : index
      %42 = vector.load %arg15[%c0_21, %c0_22] : memref<64x1xf32, #tpu.memory_space<vmem>>, vector<64x1xf32>
      tpu.vector_store %arg15[%c0_21, %c0_22], %41 {strides = array<i32>} : memref<64x1xf32, #tpu.memory_space<vmem>>, vector<64x1xf32>,
    } else {
    }
    %c1_i32 = arith.constant 1 : i32
    %25 = arith.cmpi sge, %arg0, %c1_i32 : i32
    %26 = arith.extui %25 : i1 to i32
    %c0_i32_11 = arith.constant 0 : i32
    %27 = arith.cmpi ne, %26, %c0_i32_11 : i32
    scf.if %27 {
      %c0_12 = arith.constant 0 : index
      %c0_13 = arith.constant 0 : index
      %28 = vector.load %arg14[%c0_12, %c0_13] : memref<64x1xf32, #tpu.memory_space<vmem>>, vector<64x1xf32>
      %cst_14 = arith.constant 5.000000e-03 : f32
      %29 = vector.broadcast %cst_14 : f32 to vector<64x1xf32>
      %30 = arith.mulf %28, %29 : vector<64x1xf32>
      %c0_15 = arith.constant 0 : index
      %c0_16 = arith.constant 0 : index
      %31 = vector.load %arg15[%c0_15, %c0_16] : memref<64x1xf32, #tpu.memory_space<vmem>>, vector<64x1xf32>
      %cst_17 = arith.constant 5.000000e-03 : f32
      %32 = vector.broadcast %cst_17 : f32 to vector<64x1xf32>
      %33 = arith.mulf %31, %32 : vector<64x1xf32>
      %34 = arith.mulf %30, %30 : vector<64x1xf32>
      %35 = arith.subf %33, %34 : vector<64x1xf32>
      %cst_18 = arith.constant 0.000000e+00 : f32
      %36 = vector.broadcast %cst_18 : f32 to vector<64x1xf32>
      %37 = arith.maximumf %35, %36 : vector<64x1xf32>
      %c0_19 = arith.constant 0 : index
      %c0_20 = arith.constant 0 : index
      %38 = vector.load %arg5[%c0_19, %c0_20] : memref<64x1xf32, #tpu.memory_space<vmem>>, vector<64x1xf32>
      %cst_21 = arith.constant 9.99999974E-6 : f32
      %39 = vector.broadcast %cst_21 : f32 to vector<64x1xf32>
      %40 = arith.addf %37, %39 : vector<64x1xf32>
      %41 = math.rsqrt %40 : vector<64x1xf32>
      %42 = arith.mulf %38, %41 : vector<64x1xf32>
      %c0_22 = arith.constant 0 : index
      %c0_23 = arith.constant 0 : index
      %43 = vector.load %arg6[%c0_22, %c0_23] : memref<64x1xf32, #tpu.memory_space<vmem>>, vector<64x1xf32>
      %44 = arith.mulf %30, %42 : vector<64x1xf32>
      %45 = arith.subf %43, %44 : vector<64x1xf32>
      %46 = vector.broadcast %42 : vector<64x1xf32> to vector<64x128xf32>
      %47 = arith.mulf %21, %46 : vector<64x128xf32>
      %48 = vector.broadcast %45 : vector<64x1xf32> to vector<64x128xf32>
      %49 = arith.addf %47, %48 : vector<64x128xf32>
      %c0_24 = arith.constant 0 : index
      %c0_25 = arith.constant 0 : index
      %50 = vector.load %arg7[%c0_24, %c0_25] : memref<64x64xf32, #tpu.memory_space<vmem>>, vector<64x64xf32>
      %cst_26 = arith.constant dense<0.000000e+00> : vector<64x128xf32>
      %51 = tpu.matmul %50, %49, %cst_26 {dimension_numbers = #tpu.dot_dimension_numbers<[1], [0], [0], [1], [0, 0, 1, 1], [], []>} : vector<64x64xf32>, vector<64x128xf32>, vector<64x128xf32> -> vector<64x128xf32>
      %c0_27 = arith.constant 0 : index
      %c0_28 = arith.constant 0 : index
      %52 = vector.load %arg8[%c0_27, %c0_28] : memref<64x1xf32, #tpu.memory_space<vmem>>, vector<64x1xf32>
      %53 = vector.broadcast %52 : vector<64x1xf32> to vector<64x128xf32>
      %54 = arith.addf %51, %53 : vector<64x128xf32>
      %cst_29 = arith.constant 0.000000e+00 : f32
      %55 = vector.broadcast %cst_29 : f32 to vector<64x128xf32>
      %56 = arith.maximumf %54, %55 : vector<64x128xf32>
      %c1_i32_30 = arith.constant 1 : i32
      %57 = arith.cmpi eq, %arg0, %c1_i32_30 : i32
      %58 = arith.extui %57 : i1 to i32
      %c0_i32_31 = arith.constant 0 : i32
      %59 = arith.cmpi ne, %58, %c0_i32_31 : i32
      scf.if %59 {
        %cst_34 = arith.constant 0.000000e+00 : f32
        %63 = vector.shape_cast %13 : vector<1x128xi1> to vector<1x128xi1>
        %64 = vector.broadcast %63 : vector<1x128xi1> to vector<64x128xi1>
        %65 = vector.broadcast %cst_34 : f32 to vector<64x128xf32>
        %66 = arith.select %64, %56, %65 : vector<64x128xi1>, vector<64x128xf32>
        %c0_35 = arith.constant 0 : index
        %c0_36 = arith.constant 0 : index
        %67 = vector.load %arg16[%c0_35, %c0_36] : memref<64x1xf32, #tpu.memory_space<vmem>>, vector<64x1xf32>
        %cst_37 = arith.constant dense<0.000000e+00> : vector<64xf32>
        %68 = vector.multi_reduction <add>, %66, %cst_37 [1] : vector<64x128xf32> to vector<64xf32>
        %69 = vector.shape_cast %68 : vector<64xf32> to vector<64x1xf32>
        %70 = arith.addf %67, %69 : vector<64x1xf32>
        %c0_38 = arith.constant 0 : index
        %c0_39 = arith.constant 0 : index
        %71 = vector.load %arg16[%c0_38, %c0_39] : memref<64x1xf32, #tpu.memory_space<vmem>>, vector<64x1xf32>
        tpu.vector_store %arg16[%c0_38, %c0_39], %70 {strides = array<i32>} : memref<64x1xf32, #tpu.memory_space<vmem>>, vector<64x1xf32>,
        %c0_40 = arith.constant 0 : index
        %c0_41 = arith.constant 0 : index
        %72 = vector.load %arg17[%c0_40, %c0_41] : memref<64x1xf32, #tpu.memory_space<vmem>>, vector<64x1xf32>
        %73 = arith.mulf %66, %66 : vector<64x128xf32>
        %cst_42 = arith.constant dense<0.000000e+00> : vector<64xf32>
        %74 = vector.multi_reduction <add>, %73, %cst_42 [1] : vector<64x128xf32> to vector<64xf32>
        %75 = vector.shape_cast %74 : vector<64xf32> to vector<64x1xf32>
        %76 = arith.addf %72, %75 : vector<64x1xf32>
        %c0_43 = arith.constant 0 : index
        %c0_44 = arith.constant 0 : index
        %77 = vector.load %arg17[%c0_43, %c0_44] : memref<64x1xf32, #tpu.memory_space<vmem>>, vector<64x1xf32>
        tpu.vector_store %arg17[%c0_43, %c0_44], %76 {strides = array<i32>} : memref<64x1xf32, #tpu.memory_space<vmem>>, vector<64x1xf32>,
      } else {
      }
      %c2_i32_32 = arith.constant 2 : i32
      %60 = arith.cmpi eq, %arg0, %c2_i32_32 : i32
      %61 = arith.extui %60 : i1 to i32
      %c0_i32_33 = arith.constant 0 : i32
      %62 = arith.cmpi ne, %61, %c0_i32_33 : i32
      scf.if %62 {
        %c0_34 = arith.constant 0 : index
        %c0_35 = arith.constant 0 : index
        %63 = vector.load %arg16[%c0_34, %c0_35] : memref<64x1xf32, #tpu.memory_space<vmem>>, vector<64x1xf32>
        %cst_36 = arith.constant 5.000000e-03 : f32
        %64 = vector.broadcast %cst_36 : f32 to vector<64x1xf32>
        %65 = arith.mulf %63, %64 : vector<64x1xf32>
        %c0_37 = arith.constant 0 : index
        %c0_38 = arith.constant 0 : index
        %66 = vector.load %arg17[%c0_37, %c0_38] : memref<64x1xf32, #tpu.memory_space<vmem>>, vector<64x1xf32>
        %cst_39 = arith.constant 5.000000e-03 : f32
        %67 = vector.broadcast %cst_39 : f32 to vector<64x1xf32>
        %68 = arith.mulf %66, %67 : vector<64x1xf32>
        %69 = arith.mulf %65, %65 : vector<64x1xf32>
        %70 = arith.subf %68, %69 : vector<64x1xf32>
        %cst_40 = arith.constant 0.000000e+00 : f32
        %71 = vector.broadcast %cst_40 : f32 to vector<64x1xf32>
        %72 = arith.maximumf %70, %71 : vector<64x1xf32>
        %c0_41 = arith.constant 0 : index
        %c0_42 = arith.constant 0 : index
        %73 = vector.load %arg9[%c0_41, %c0_42] : memref<64x1xf32, #tpu.memory_space<vmem>>, vector<64x1xf32>
        %cst_43 = arith.constant 9.99999974E-6 : f32
        %74 = vector.broadcast %cst_43 : f32 to vector<64x1xf32>
        %75 = arith.addf %72, %74 : vector<64x1xf32>
        %76 = math.rsqrt %75 : vector<64x1xf32>
        %77 = arith.mulf %73, %76 : vector<64x1xf32>
        %c0_44 = arith.constant 0 : index
        %c0_45 = arith.constant 0 : index
        %78 = vector.load %arg10[%c0_44, %c0_45] : memref<64x1xf32, #tpu.memory_space<vmem>>, vector<64x1xf32>
        %79 = arith.mulf %65, %77 : vector<64x1xf32>
        %80 = arith.subf %78, %79 : vector<64x1xf32>
        %81 = vector.broadcast %77 : vector<64x1xf32> to vector<64x128xf32>
        %82 = arith.mulf %56, %81 : vector<64x128xf32>
        %83 = vector.broadcast %80 : vector<64x1xf32> to vector<64x128xf32>
        %84 = arith.addf %82, %83 : vector<64x128xf32>
        %c0_46 = arith.constant 0 : index
        %c0_47 = arith.constant 0 : index
        %85 = vector.load %arg11[%c0_46, %c0_47] : memref<1x64xf32, #tpu.memory_space<vmem>>, vector<1x64xf32>
        %cst_48 = arith.constant dense<0.000000e+00> : vector<1x128xf32>
        %86 = tpu.matmul %85, %84, %cst_48 {dimension_numbers = #tpu.dot_dimension_numbers<[1], [0], [0], [1], [0, 0, 1, 1], [], []>} : vector<1x64xf32>, vector<64x128xf32>, vector<1x128xf32> -> vector<1x128xf32>
        %c0_49 = arith.constant 0 : index
        %c0_50 = arith.constant 0 : index
        %87 = vector.load %arg12[%c0_49, %c0_50] : memref<1x1xf32, #tpu.memory_space<vmem>>, vector<1x1xf32>
        %88 = vector.broadcast %87 : vector<1x1xf32> to vector<1x128xf32>
        %89 = arith.addf %86, %88 : vector<1x128xf32>
        %c0_51 = arith.constant 0 : index
        %c0_52 = arith.constant 0 : index
        %90 = vector.load %arg13[%c0_51, %c0_52] : memref<1x128xf32, #tpu.memory_space<vmem>>, vector<1x128xf32>
        tpu.vector_store %arg13[%c0_51, %c0_52], %89 {strides = array<i32>} : memref<1x128xf32, #tpu.memory_space<vmem>>, vector<1x128xf32>,
      } else {
      }
    } else {
    }
    return
  }
  func.func @transform_0(%arg0: i32, %arg1: i32) -> (i32, i32) {
    %c0_i32 = arith.constant 0 : i32
    %c0_i32_0 = arith.constant 0 : i32
    return %c0_i32, %arg1 : i32, i32
  }
  func.func @transform_1(%arg0: i32, %arg1: i32) -> (i32, i32) {
    %c0_i32 = arith.constant 0 : i32
    %c0_i32_0 = arith.constant 0 : i32
    %c0_i32_1 = arith.constant 0 : i32
    return %c0_i32, %c0_i32_0 : i32, i32
  }
  func.func @transform_2(%arg0: i32, %arg1: i32) -> (i32, i32) {
    %c0_i32 = arith.constant 0 : i32
    %c0_i32_0 = arith.constant 0 : i32
    %c0_i32_1 = arith.constant 0 : i32
    return %c0_i32, %c0_i32_0 : i32, i32
  }
  func.func @transform_3(%arg0: i32, %arg1: i32) -> (i32, i32) {
    %c0_i32 = arith.constant 0 : i32
    %c0_i32_0 = arith.constant 0 : i32
    %c0_i32_1 = arith.constant 0 : i32
    return %c0_i32, %c0_i32_0 : i32, i32
  }
  func.func @transform_4(%arg0: i32, %arg1: i32) -> (i32, i32) {
    %c0_i32 = arith.constant 0 : i32
    %c0_i32_0 = arith.constant 0 : i32
    %c0_i32_1 = arith.constant 0 : i32
    return %c0_i32, %c0_i32_0 : i32, i32
  }
  func.func @transform_5(%arg0: i32, %arg1: i32) -> (i32, i32) {
    %c0_i32 = arith.constant 0 : i32
    %c0_i32_0 = arith.constant 0 : i32
    %c0_i32_1 = arith.constant 0 : i32
    return %c0_i32, %c0_i32_0 : i32, i32
  }
  func.func @transform_6(%arg0: i32, %arg1: i32) -> (i32, i32) {
    %c0_i32 = arith.constant 0 : i32
    %c0_i32_0 = arith.constant 0 : i32
    %c0_i32_1 = arith.constant 0 : i32
    return %c0_i32, %c0_i32_0 : i32, i32
  }
  func.func @transform_7(%arg0: i32, %arg1: i32) -> (i32, i32) {
    %c0_i32 = arith.constant 0 : i32
    %c0_i32_0 = arith.constant 0 : i32
    %c0_i32_1 = arith.constant 0 : i32
    return %c0_i32, %c0_i32_0 : i32, i32
  }
  func.func @transform_8(%arg0: i32, %arg1: i32) -> (i32, i32) {
    %c0_i32 = arith.constant 0 : i32
    %c0_i32_0 = arith.constant 0 : i32
    %c0_i32_1 = arith.constant 0 : i32
    return %c0_i32, %c0_i32_0 : i32, i32
  }
  func.func @transform_9(%arg0: i32, %arg1: i32) -> (i32, i32) {
    %c0_i32 = arith.constant 0 : i32
    %c0_i32_0 = arith.constant 0 : i32
    %c0_i32_1 = arith.constant 0 : i32
    return %c0_i32, %c0_i32_0 : i32, i32
  }
  func.func @transform_10(%arg0: i32, %arg1: i32) -> (i32, i32) {
    %c0_i32 = arith.constant 0 : i32
    %c0_i32_0 = arith.constant 0 : i32
    %c0_i32_1 = arith.constant 0 : i32
    return %c0_i32, %c0_i32_0 : i32, i32
  }
  func.func @transform_11(%arg0: i32, %arg1: i32) -> (i32, i32) {
    %c0_i32 = arith.constant 0 : i32
    %c0_i32_0 = arith.constant 0 : i32
    return %c0_i32, %arg1 : i32, i32
  }
}

</mosaic_0001>

<llo_original>
// kernel: tpu_custom_call.1
$region0: #{tpu_custom_call.1}
  #allocation0 [shape = 'u32[]', space=smem, size = 0x4, offset = 0x4, fixed_abs, tag = 'smem constant byte address 0x4 - core index']
  #allocation1 [shape = 'u32[144,128]{1,0:T(1,128)}', space=vmem, size = 0x12000, scoped, tag = 'internal scratch']
  #allocation2 [shape = 'f32[64,1]{1,0:T(8,128)}', space=vmem, size = 0x8000, scoped, tag = 'scratch operand']
  #allocation3 [shape = 'f32[64,1]{1,0:T(8,128)}', space=vmem, size = 0x8000, scoped, tag = 'scratch operand']
  #allocation4 [shape = 'f32[64,1]{1,0:T(8,128)}', space=vmem, size = 0x8000, scoped, tag = 'scratch operand']
  #allocation5 [shape = 'f32[64,1]{1,0:T(8,128)}', space=vmem, size = 0x8000, scoped, tag = 'scratch operand']
  #allocation6 [shape = 'f32[1,1]{1,0:T(1,128)S(1)}', space=vmem, size = 0x200, scoped, tag = 'scoped memory for tpu_custom_call.1']
  %s0 = inlined_call_operand.vmem [shape: f32[8,256], index: 0, kind: input, shape index: {}]
  %s1 = inlined_call_operand.vmem [shape: f32[64,8], index: 1, kind: input, shape index: {}]
  %s2 = inlined_call_operand.vmem [shape: f32[64,1], index: 2, kind: input, shape index: {}]
  %s3 = inlined_call_operand.vmem [shape: f32[64,1], index: 3, kind: input, shape index: {}]
  %s4 = inlined_call_operand.vmem [shape: f32[64,1], index: 4, kind: input, shape index: {}]
  %s5 = inlined_call_operand.vmem [shape: f32[64,64], index: 5, kind: input, shape index: {}]
  %s6 = inlined_call_operand.vmem [shape: f32[64,1], index: 6, kind: input, shape index: {}]
  %s7 = inlined_call_operand.vmem [shape: f32[64,1], index: 7, kind: input, shape index: {}]
  %s8 = inlined_call_operand.vmem [shape: f32[64,1], index: 8, kind: input, shape index: {}]
  %s9 = inlined_call_operand.vmem [shape: f32[1,64], index: 9, kind: input, shape index: {}]
  %s10 = inlined_call_operand.<no memory space> [shape: f32[1,1], index: 10, kind: input, shape index: {}]
  %s11 = inlined_call_operand.hbm [shape: f32[1,256], index: 11, kind: output, shape index: {}]
  %s12 = sld [smem:[#allocation0]]
  $region101: #{tpu_custom_call.1} parent=0
    _
  %s14 = ssub.s32 1, %s12
  %s15 = scalar_select 0, %s14, %s12
  %v16 = vstv %s10
  %17 = vst [vmem:[#allocation6] sm:$0x1] %v16
  $region1: #{tpu_custom_call.1} parent=0
    #allocation7 [shape = 'u8[1024]{0}', space=vmem, size = 0x400, scoped, tag = 'output window, operand 0']
    #allocation8 [shape = 's32[2]{0}', space=sflag, size = 0x8, scoped, tag = 'scoped memory for tpu_custom_call.1']
    %18 = vsyncpa [#allocation8], 0
    %s19 = scalar_lea.sflag [#allocation8], 1
    %20 = vsyncpa %s19, 0
    loop: start=0, step=1, limit=8
    $region2: #{tpu_custom_call.1} parent=1 // loop_pre_header
      _
    $region3: #{tpu_custom_call.1} parent=1 // loop_header
      %s22 = sphi 0, %s26
      %p23 = scmp.ge.s32.totalorder %s22, 8
      %s29 = sphi 0, %s41
      %s30 = sphi 0, %s37
      %s31 = sphi 0, %s29
      %s32 = sphi 0, %s30
      %s33 = sphi 0, %s31
      %s34 = sphi 0, %s32
      %s44 = sphi 0, %s46
      %s47 = sphi 0, %s44
      %s48 = sphi 0, %s47
      %s64 = sphi 0, %s48
      %s68 = sphi 0, %s68
      %s70 = sphi 0, %s68
      %s71 = sphi 0, %s70
      %s85 = sphi 0, %s71
      %s89 = sphi 0, %s89
      %s91 = sphi 0, %s89
      %s92 = sphi 0, %s91
      %s106 = sphi 0, %s92
      %s110 = sphi 0, %s110
      %s112 = sphi 0, %s110
      %s113 = sphi 0, %s112
      %s127 = sphi 0, %s113
      %s131 = sphi 0, %s131
      %s133 = sphi 0, %s131
      %s134 = sphi 0, %s133
      %s148 = sphi 0, %s134
      %s152 = sphi 0, %s152
      %s154 = sphi 0, %s152
      %s155 = sphi 0, %s154
      %s169 = sphi 0, %s155
      %s173 = sphi 0, %s173
      %s175 = sphi 0, %s173
      %s176 = sphi 0, %s175
      %s190 = sphi 0, %s176
      %s194 = sphi 0, %s194
      %s196 = sphi 0, %s194
      %s197 = sphi 0, %s196
      %s211 = sphi 0, %s197
      %s215 = sphi 0, %s215
      %s217 = sphi 0, %s215
      %s218 = sphi 0, %s217
      %s232 = sphi 0, %s218
      %s236 = sphi 0, %s236
      %s238 = sphi 0, %s236
      %s239 = sphi 0, %s238
      %s253 = sphi 0, %s239
      %s257 = sphi 0, %s257
      %s259 = sphi 0, %s257
      %s260 = sphi 0, %s259
      %s274 = sphi 0, %s260
      %s280 = sphi 0, %s282
      %s283 = sphi 0, %s280
      %s284 = sphi 0, %s283
      %s300 = sphi 0, %s284
    $region4: #{tpu_custom_call.1} parent=1 // loop_header_branch
      %25 = sbr.rel (%p23) target = $region8
    $region5: #{tpu_custom_call.1} parent=1 // loop_body
      %s27 = ssub.s32 %s22, 1
      %s28 = ssub.s32 %s22, 2
      %s35 = sadd.s32 1, %s30
      %p36 = scmp.ge.s32.totalorder %s35, 2
      %s37 = scalar_select %p36, 0, %s35
      %s38 = sadd.s32 1, %s29
      %s39 = scalar_select %p36, %s38, %s29
      %p40 = scmp.ge.s32.totalorder %s39, 3
      %s41 = scalar_select %p40, 0, %s39
      %s42 = ssub.s32 %s30, %s37
      %p43 = scmp.eq.s32.totalorder %s42, 0
      %s45 = sadd.s32 %s44, 1
      %s46 = scalar_select %p43, %s44, %s45
      %p49 = pneg %p43
      %p50 = scmp.eq.s32.totalorder %s22, 5
      %p51 = por %p49, %p50
      %p52 = scmp.ne.s32.totalorder %s44, %s47
      %p53 = scmp.eq.s32.totalorder %s22, 0
      %p54 = por %p52, %p53
      %p55 = scmp.ne.s32.totalorder %s44, %s47
      %p56 = scmp.eq.s32.totalorder %s27, 5
      %p57 = por %p55, %p56
      %p58 = scmp.ne.s32.totalorder %s47, %s48
      %p59 = scmp.eq.s32.totalorder %s27, 0
      %p60 = por %p58, %p59
      %p61 = scmp.ne.s32.totalorder %s47, %s48
      %p62 = scmp.eq.s32.totalorder %s28, 5
      %p63 = por %p61, %p62
      %p65 = scmp.ne.s32.totalorder %s48, %s64
      %p66 = scmp.eq.s32.totalorder %s28, 0
      %p67 = por %p65, %p66
      %s69 = sadd.s32 %s68, 1
      %p72 = scmp.eq.s32.totalorder %s22, 5
      %p73 = scmp.ne.s32.totalorder %s68, %s70
      %p74 = scmp.eq.s32.totalorder %s22, 0
      %p75 = por %p73, %p74
      %p76 = scmp.ne.s32.totalorder %s68, %s70
      %p77 = scmp.eq.s32.totalorder %s27, 5
      %p78 = por %p76, %p77
      %p79 = scmp.ne.s32.totalorder %s70, %s71
      %p80 = scmp.eq.s32.totalorder %s27, 0
      %p81 = por %p79, %p80
      %p82 = scmp.ne.s32.totalorder %s70, %s71
      %p83 = scmp.eq.s32.totalorder %s28, 5
      %p84 = por %p82, %p83
      %p86 = scmp.ne.s32.totalorder %s71, %s85
      %p87 = scmp.eq.s32.totalorder %s28, 0
      %p88 = por %p86, %p87
      %s90 = sadd.s32 %s89, 1
      %p93 = scmp.eq.s32.totalorder %s22, 5
      %p94 = scmp.ne.s32.totalorder %s89, %s91
      %p95 = scmp.eq.s32.totalorder %s22, 0
      %p96 = por %p94, %p95
      %p97 = scmp.ne.s32.totalorder %s89, %s91
      %p98 = scmp.eq.s32.totalorder %s27, 5
      %p99 = por %p97, %p98
      %p100 = scmp.ne.s32.totalorder %s91, %s92
      %p101 = scmp.eq.s32.totalorder %s27, 0
      %p102 = por %p100, %p101
      %p103 = scmp.ne.s32.totalorder %s91, %s92
      %p104 = scmp.eq.s32.totalorder %s28, 5
      %p105 = por %p103, %p104
      %p107 = scmp.ne.s32.totalorder %s92, %s106
      %p108 = scmp.eq.s32.totalorder %s28, 0
      %p109 = por %p107, %p108
      %s111 = sadd.s32 %s110, 1
      %p114 = scmp.eq.s32.totalorder %s22, 5
      %p115 = scmp.ne.s32.totalorder %s110, %s112
      %p116 = scmp.eq.s32.totalorder %s22, 0
      %p117 = por %p115, %p116
      %p118 = scmp.ne.s32.totalorder %s110, %s112
      %p119 = scmp.eq.s32.totalorder %s27, 5
      %p120 = por %p118, %p119
      %p121 = scmp.ne.s32.totalorder %s112, %s113
      %p122 = scmp.eq.s32.totalorder %s27, 0
      %p123 = por %p121, %p122
      %p124 = scmp.ne.s32.totalorder %s112, %s113
      %p125 = scmp.eq.s32.totalorder %s28, 5
      %p126 = por %p124, %p125
      %p128 = scmp.ne.s32.totalorder %s113, %s127
      %p129 = scmp.eq.s32.totalorder %s28, 0
      %p130 = por %p128, %p129
      %s132 = sadd.s32 %s131, 1
      %p135 = scmp.eq.s32.totalorder %s22, 5
      %p136 = scmp.ne.s32.totalorder %s131, %s133
      %p137 = scmp.eq.s32.totalorder %s22, 0
      %p138 = por %p136, %p137
      %p139 = scmp.ne.s32.totalorder %s131, %s133
      %p140 = scmp.eq.s32.totalorder %s27, 5
      %p141 = por %p139, %p140
      %p142 = scmp.ne.s32.totalorder %s133, %s134
      %p143 = scmp.eq.s32.totalorder %s27, 0
      %p144 = por %p142, %p143
      %p145 = scmp.ne.s32.totalorder %s133, %s134
      %p146 = scmp.eq.s32.totalorder %s28, 5
      %p147 = por %p145, %p146
      %p149 = scmp.ne.s32.totalorder %s134, %s148
      %p150 = scmp.eq.s32.totalorder %s28, 0
      %p151 = por %p149, %p150
      %s153 = sadd.s32 %s152, 1
      %p156 = scmp.eq.s32.totalorder %s22, 5
      %p157 = scmp.ne.s32.totalorder %s152, %s154
      %p158 = scmp.eq.s32.totalorder %s22, 0
      %p159 = por %p157, %p158
      %p160 = scmp.ne.s32.totalorder %s152, %s154
      %p161 = scmp.eq.s32.totalorder %s27, 5
      %p162 = por %p160, %p161
      %p163 = scmp.ne.s32.totalorder %s154, %s155
      %p164 = scmp.eq.s32.totalorder %s27, 0
      %p165 = por %p163, %p164
      %p166 = scmp.ne.s32.totalorder %s154, %s155
      %p167 = scmp.eq.s32.totalorder %s28, 5
      %p168 = por %p166, %p167
      %p170 = scmp.ne.s32.totalorder %s155, %s169
      %p171 = scmp.eq.s32.totalorder %s28, 0
      %p172 = por %p170, %p171
      %s174 = sadd.s32 %s173, 1
      %p177 = scmp.eq.s32.totalorder %s22, 5
      %p178 = scmp.ne.s32.totalorder %s173, %s175
      %p179 = scmp.eq.s32.totalorder %s22, 0
      %p180 = por %p178, %p179
      %p181 = scmp.ne.s32.totalorder %s173, %s175
      %p182 = scmp.eq.s32.totalorder %s27, 5
      %p183 = por %p181, %p182
      %p184 = scmp.ne.s32.totalorder %s175, %s176
      %p185 = scmp.eq.s32.totalorder %s27, 0
      %p186 = por %p184, %p185
      %p187 = scmp.ne.s32.totalorder %s175, %s176
      %p188 = scmp.eq.s32.totalorder %s28, 5
      %p189 = por %p187, %p188
      %p191 = scmp.ne.s32.totalorder %s176, %s190
      %p192 = scmp.eq.s32.totalorder %s28, 0
      %p193 = por %p191, %p192
      %s195 = sadd.s32 %s194, 1
      %p198 = scmp.eq.s32.totalorder %s22, 5
      %p199 = scmp.ne.s32.totalorder %s194, %s196
      %p200 = scmp.eq.s32.totalorder %s22, 0
      %p201 = por %p199, %p200
      %p202 = scmp.ne.s32.totalorder %s194, %s196
      %p203 = scmp.eq.s32.totalorder %s27, 5
      %p204 = por %p202, %p203
      %p205 = scmp.ne.s32.totalorder %s196, %s197
      %p206 = scmp.eq.s32.totalorder %s27, 0
      %p207 = por %p205, %p206
      %p208 = scmp.ne.s32.totalorder %s196, %s197
      %p209 = scmp.eq.s32.totalorder %s28, 5
      %p210 = por %p208, %p209
      %p212 = scmp.ne.s32.totalorder %s197, %s211
      %p213 = scmp.eq.s32.totalorder %s28, 0
      %p214 = por %p212, %p213
      %s216 = sadd.s32 %s215, 1
      %p219 = scmp.eq.s32.totalorder %s22, 5
      %p220 = scmp.ne.s32.totalorder %s215, %s217
      %p221 = scmp.eq.s32.totalorder %s22, 0
      %p222 = por %p220, %p221
      %p223 = scmp.ne.s32.totalorder %s215, %s217
      %p224 = scmp.eq.s32.totalorder %s27, 5
      %p225 = por %p223, %p224
      %p226 = scmp.ne.s32.totalorder %s217, %s218
      %p227 = scmp.eq.s32.totalorder %s27, 0
      %p228 = por %p226, %p227
      %p229 = scmp.ne.s32.totalorder %s217, %s218
      %p230 = scmp.eq.s32.totalorder %s28, 5
      %p231 = por %p229, %p230
      %p233 = scmp.ne.s32.totalorder %s218, %s232
      %p234 = scmp.eq.s32.totalorder %s28, 0
      %p235 = por %p233, %p234
      %s237 = sadd.s32 %s236, 1
      %p240 = scmp.eq.s32.totalorder %s22, 5
      %p241 = scmp.ne.s32.totalorder %s236, %s238
      %p242 = scmp.eq.s32.totalorder %s22, 0
      %p243 = por %p241, %p242
      %p244 = scmp.ne.s32.totalorder %s236, %s238
      %p245 = scmp.eq.s32.totalorder %s27, 5
      %p246 = por %p244, %p245
      %p247 = scmp.ne.s32.totalorder %s238, %s239
      %p248 = scmp.eq.s32.totalorder %s27, 0
      %p249 = por %p247, %p248
      %p250 = scmp.ne.s32.totalorder %s238, %s239
      %p251 = scmp.eq.s32.totalorder %s28, 5
      %p252 = por %p250, %p251
      %p254 = scmp.ne.s32.totalorder %s239, %s253
      %p255 = scmp.eq.s32.totalorder %s28, 0
      %p256 = por %p254, %p255
      %s258 = sadd.s32 %s257, 1
      %p261 = scmp.eq.s32.totalorder %s22, 5
      %p262 = scmp.ne.s32.totalorder %s257, %s259
      %p263 = scmp.eq.s32.totalorder %s22, 0
      %p264 = por %p262, %p263
      %p265 = scmp.ne.s32.totalorder %s257, %s259
      %p266 = scmp.eq.s32.totalorder %s27, 5
      %p267 = por %p265, %p266
      %p268 = scmp.ne.s32.totalorder %s259, %s260
      %p269 = scmp.eq.s32.totalorder %s27, 0
      %p270 = por %p268, %p269
      %p271 = scmp.ne.s32.totalorder %s259, %s260
      %p272 = scmp.eq.s32.totalorder %s28, 5
      %p273 = por %p271, %p272
      %p275 = scmp.ne.s32.totalorder %s260, %s274
      %p276 = scmp.eq.s32.totalorder %s28, 0
      %p277 = por %p275, %p276
      %s278 = ssub.s32 %s30, %s37
      %p279 = scmp.eq.s32.totalorder %s278, 0
      %s281 = sadd.s32 %s280, 1
      %s282 = scalar_select %p279, %s280, %s281
      %p285 = pneg %p279
      %p286 = scmp.eq.s32.totalorder %s22, 5
      %p287 = por %p285, %p286
      %p288 = scmp.ne.s32.totalorder %s280, %s283
      %p289 = scmp.eq.s32.totalorder %s22, 0
      %p290 = por %p288, %p289
      %p291 = scmp.ne.s32.totalorder %s280, %s283
      %p292 = scmp.eq.s32.totalorder %s27, 5
      %p293 = por %p291, %p292
      %p294 = scmp.ne.s32.totalorder %s283, %s284
      %p295 = scmp.eq.s32.totalorder %s27, 0
      %p296 = por %p294, %p295
      %p297 = scmp.ne.s32.totalorder %s283, %s284
      %p298 = scmp.eq.s32.totalorder %s28, 5
      %p299 = por %p297, %p298
      %p301 = scmp.ne.s32.totalorder %s284, %s300
      %p302 = scmp.eq.s32.totalorder %s28, 0
      %p303 = por %p301, %p302
      %p304 = scmp.le.s32.totalorder 1, %s22
      %p305 = scmp.lt.s32.totalorder %s22, 7
      %p306 = pnand %p304, %p305
      %p307 = pneg %p306
      // Predicated region
      $region9: #{tpu_custom_call.1} parent=5 // pred_check
        _
      $region10: #{tpu_custom_call.1} parent=5 // pred_check_branch
        %309 = sbr.rel (%p306) target = $region12
      $region11: #{tpu_custom_call.1} parent=5 // pred_region
        %s310 = ssub.s32 %s22, 1
        // Predicated region
        $region13: #{tpu_custom_call.1} parent=11 // pred_check
          %p311 = pneg %p81
        $region14: #{tpu_custom_call.1} parent=11 // pred_check_branch
          %313 = sbr.rel (%p311) target = $region16
        $region15: #{tpu_custom_call.1} parent=11 // pred_region
          _
        $region16: #{tpu_custom_call.1} parent=11 // pred_fallthru
          _
        // Predicated region
        $region17: #{tpu_custom_call.1} parent=11 // pred_check
          %p314 = pneg %p102
        $region18: #{tpu_custom_call.1} parent=11 // pred_check_branch
          %316 = sbr.rel (%p314) target = $region20
        $region19: #{tpu_custom_call.1} parent=11 // pred_region
          _
        $region20: #{tpu_custom_call.1} parent=11 // pred_fallthru
          _
        // Predicated region
        $region21: #{tpu_custom_call.1} parent=11 // pred_check
          %p317 = pneg %p123
        $region22: #{tpu_custom_call.1} parent=11 // pred_check_branch
          %319 = sbr.rel (%p317) target = $region24
        $region23: #{tpu_custom_call.1} parent=11 // pred_region
          _
        $region24: #{tpu_custom_call.1} parent=11 // pred_fallthru
          _
        // Predicated region
        $region25: #{tpu_custom_call.1} parent=11 // pred_check
          %p320 = pneg %p144
        $region26: #{tpu_custom_call.1} parent=11 // pred_check_branch
          %322 = sbr.rel (%p320) target = $region28
        $region27: #{tpu_custom_call.1} parent=11 // pred_region
          _
        $region28: #{tpu_custom_call.1} parent=11 // pred_fallthru
          _
        // Predicated region
        $region29: #{tpu_custom_call.1} parent=11 // pred_check
          %p323 = pneg %p165
        $region30: #{tpu_custom_call.1} parent=11 // pred_check_branch
          %325 = sbr.rel (%p323) target = $region32
        $region31: #{tpu_custom_call.1} parent=11 // pred_region
          _
        $region32: #{tpu_custom_call.1} parent=11 // pred_fallthru
          _
        // Predicated region
        $region33: #{tpu_custom_call.1} parent=11 // pred_check
          %p326 = pneg %p186
        $region34: #{tpu_custom_call.1} parent=11 // pred_check_branch
          %328 = sbr.rel (%p326) target = $region36
        $region35: #{tpu_custom_call.1} parent=11 // pred_region
          _
        $region36: #{tpu_custom_call.1} parent=11 // pred_fallthru
          _
        // Predicated region
        $region37: #{tpu_custom_call.1} parent=11 // pred_check
          %p329 = pneg %p207
        $region38: #{tpu_custom_call.1} parent=11 // pred_check_branch
          %331 = sbr.rel (%p329) target = $region40
        $region39: #{tpu_custom_call.1} parent=11 // pred_region
          _
        $region40: #{tpu_custom_call.1} parent=11 // pred_fallthru
          _
        // Predicated region
        $region41: #{tpu_custom_call.1} parent=11 // pred_check
          %p332 = pneg %p228
        $region42: #{tpu_custom_call.1} parent=11 // pred_check_branch
          %334 = sbr.rel (%p332) target = $region44
        $region43: #{tpu_custom_call.1} parent=11 // pred_region
          _
        $region44: #{tpu_custom_call.1} parent=11 // pred_fallthru
          _
        // Predicated region
        $region45: #{tpu_custom_call.1} parent=11 // pred_check
          %p335 = pneg %p249
        $region46: #{tpu_custom_call.1} parent=11 // pred_check_branch
          %337 = sbr.rel (%p335) target = $region48
        $region47: #{tpu_custom_call.1} parent=11 // pred_region
          _
        $region48: #{tpu_custom_call.1} parent=11 // pred_fallthru
          _
        // Predicated region
        $region49: #{tpu_custom_call.1} parent=11 // pred_check
          %p338 = pneg %p270
        $region50: #{tpu_custom_call.1} parent=11 // pred_check_branch
          %340 = sbr.rel (%p338) target = $region52
        $region51: #{tpu_custom_call.1} parent=11 // pred_region
          _
        $region52: #{tpu_custom_call.1} parent=11 // pred_fallthru
          _
      $region12: #{tpu_custom_call.1} parent=5 // pred_fallthru
        _
      %p341 = scmp.lt.s32.totalorder %s22, 6
      // Predicated region
      $region53: #{tpu_custom_call.1} parent=5 // pred_check
        %p342 = pneg %p341
      $region54: #{tpu_custom_call.1} parent=5 // pred_check_branch
        %344 = sbr.rel (%p342) target = $region56
      $region55: #{tpu_custom_call.1} parent=5 // pred_region
        // Predicated region
        $region57: #{tpu_custom_call.1} parent=55 // pred_check
          %p345 = pneg %p54
        $region58: #{tpu_custom_call.1} parent=55 // pred_check_branch
          %347 = sbr.rel (%p345) target = $region60
        $region59: #{tpu_custom_call.1} parent=55 // pred_region
          %p348 = scmp.lt.s32.totalorder %s30, 1
          %s349 = scalar_select %p348, %s30, 1
          %s350 = smul.addr %s349, 8
          %s351 = scalar_lea.vmem %s0, %s350
        $region60: #{tpu_custom_call.1} parent=55 // pred_fallthru
          _
      $region56: #{tpu_custom_call.1} parent=5 // pred_fallthru
        _
      %p352 = scmp.le.s32.totalorder 1, %s22
      %p353 = scmp.lt.s32.totalorder %s22, 7
      %p354 = pnand %p352, %p353
      %p355 = pneg %p354
      // Predicated region
      $region61: #{tpu_custom_call.1} parent=5 // pred_check
        _
      $region62: #{tpu_custom_call.1} parent=5 // pred_check_branch
        %357 = sbr.rel (%p354) target = $region64
      $region63: #{tpu_custom_call.1} parent=5 // pred_region
        %s358 = ssub.s32 %s22, 1
        %p359 = scmp.lt.s32.totalorder %s32, 1
        %s360 = scalar_select %p359, %s32, 1
        %s361 = smul.addr %s360, 8
        %s362 = scalar_lea.vmem %s0, %s361
        %p363 = pneg %p60
        %p364 = pneg %p57
        %p365 = pneg %p81
        %p366 = pneg %p78
        %p367 = pneg %p102
        %p368 = pneg %p99
        %p369 = pneg %p123
        %p370 = pneg %p120
        %p371 = pneg %p144
        %p372 = pneg %p141
        %p373 = pneg %p165
        %p374 = pneg %p162
        %p375 = pneg %p186
        %p376 = pneg %p183
        %p377 = pneg %p207
        %p378 = pneg %p204
        %p379 = pneg %p228
        %p380 = pneg %p225
        %p381 = pneg %p249
        %p382 = pneg %p246
        %p383 = pneg %p270
        %p384 = pneg %p267
        %p385 = pneg %p296
        %p386 = pneg %p293
        %s387 = sand.u32 %s283, 1
        %s388 = scalar_lea.sflag [#allocation8], %s387
        %s389 = sand.u32 %s283, 1
        %s390 = scalar_lea.vmem [#allocation7], %s389
        %p391 = scmp.lt.s32.totalorder %s32, 1
        %s392 = scalar_select %p391, %s32, 1
        %s393 = smul.addr %s392, 8
        %s394 = scalar_lea.vmem %s0, %s393
        %p395 = scmp.eq.s32.totalorder %s31, 0
        %p396 = scmp.eq.s32.totalorder %s32, 0
        %p397 = pnand %p395, %p396
        %p398 = pneg %p397
        // Predicated region
        $region65: #{tpu_custom_call.1} parent=63 // pred_check
          _
        $region66: #{tpu_custom_call.1} parent=63 // pred_check_branch
          %400 = sbr.rel (%p397) target = $region68
        $region67: #{tpu_custom_call.1} parent=63 // pred_region
          %vm401 = vcmask 7168
          %402 = vst.msk [vmem:[#allocation2] sm:$0xff] %vm401, 0.0
          %403 = vst.msk [vmem:[#allocation2 + $0x8] sm:$0xff] %vm401, 0.0
          %404 = vst.msk [vmem:[#allocation2 + $0x10] sm:$0xff] %vm401, 0.0
          %405 = vst.msk [vmem:[#allocation2 + $0x18] sm:$0xff] %vm401, 0.0
          %406 = vst.msk [vmem:[#allocation2 + $0x20] sm:$0xff] %vm401, 0.0
          %407 = vst.msk [vmem:[#allocation2 + $0x28] sm:$0xff] %vm401, 0.0
          %408 = vst.msk [vmem:[#allocation2 + $0x30] sm:$0xff] %vm401, 0.0
          %409 = vst.msk [vmem:[#allocation2 + $0x38] sm:$0xff] %vm401, 0.0
          %410 = vst.msk [vmem:[#allocation3] sm:$0xff] %vm401, 0.0
          %411 = vst.msk [vmem:[#allocation3 + $0x8] sm:$0xff] %vm401, 0.0
          %412 = vst.msk [vmem:[#allocation3 + $0x10] sm:$0xff] %vm401, 0.0
          %413 = vst.msk [vmem:[#allocation3 + $0x18] sm:$0xff] %vm401, 0.0
          %414 = vst.msk [vmem:[#allocation3 + $0x20] sm:$0xff] %vm401, 0.0
          %415 = vst.msk [vmem:[#allocation3 + $0x28] sm:$0xff] %vm401, 0.0
          %416 = vst.msk [vmem:[#allocation3 + $0x30] sm:$0xff] %vm401, 0.0
          %417 = vst.msk [vmem:[#allocation3 + $0x38] sm:$0xff] %vm401, 0.0
          %418 = vst.msk [vmem:[#allocation4] sm:$0xff] %vm401, 0.0
          %419 = vst.msk [vmem:[#allocation4 + $0x8] sm:$0xff] %vm401, 0.0
          %420 = vst.msk [vmem:[#allocation4 + $0x10] sm:$0xff] %vm401, 0.0
          %421 = vst.msk [vmem:[#allocation4 + $0x18] sm:$0xff] %vm401, 0.0
          %422 = vst.msk [vmem:[#allocation4 + $0x20] sm:$0xff] %vm401, 0.0
          %423 = vst.msk [vmem:[#allocation4 + $0x28] sm:$0xff] %vm401, 0.0
          %424 = vst.msk [vmem:[#allocation4 + $0x30] sm:$0xff] %vm401, 0.0
          %425 = vst.msk [vmem:[#allocation4 + $0x38] sm:$0xff] %vm401, 0.0
          %426 = vst.msk [vmem:[#allocation5] sm:$0xff] %vm401, 0.0
          %427 = vst.msk [vmem:[#allocation5 + $0x8] sm:$0xff] %vm401, 0.0
          %428 = vst.msk [vmem:[#allocation5 + $0x10] sm:$0xff] %vm401, 0.0
          %429 = vst.msk [vmem:[#allocation5 + $0x18] sm:$0xff] %vm401, 0.0
          %430 = vst.msk [vmem:[#allocation5 + $0x20] sm:$0xff] %vm401, 0.0
          %431 = vst.msk [vmem:[#allocation5 + $0x28] sm:$0xff] %vm401, 0.0
          %432 = vst.msk [vmem:[#allocation5 + $0x30] sm:$0xff] %vm401, 0.0
          %433 = vst.msk [vmem:[#allocation5 + $0x38] sm:$0xff] %vm401, 0.0
        $region68: #{tpu_custom_call.1} parent=63 // pred_fallthru
          _
        %p434 = scmp.ne.s32.totalorder %s31, 2
        // Predicated region
        $region69: #{tpu_custom_call.1} parent=63 // pred_check
          %p435 = pneg %p434
        $region70: #{tpu_custom_call.1} parent=63 // pred_check_branch
          %437 = sbr.rel (%p435) target = $region72
        $region71: #{tpu_custom_call.1} parent=63 // pred_region
          %438 = vst [vmem:[%s390] sm:$0x1] 0.0
        $region72: #{tpu_custom_call.1} parent=63 // pred_fallthru
          _
        %s439 = smul.u32 %s32, 128
        %v440 = vlaneseq
        %v441 = vand.u32 %v440, 127
        %v442 = vstv %s439
        %v443 = vadd.s32 %v442, %v441
        %vm444 = vcmp.lt.s32.totalorder %v443, 200
        %v445 = vld [vmem:[%s1] sm:$0xff]
        %v446 = vld [vmem:[%s1 + $0x8] sm:$0xff]
        %v447 = vld [vmem:[%s1 + $0x10] sm:$0xff]
        %v448 = vld [vmem:[%s1 + $0x18] sm:$0xff]
        %v449 = vld [vmem:[%s1 + $0x20] sm:$0xff]
        %v450 = vld [vmem:[%s1 + $0x28] sm:$0xff]
        %v451 = vld [vmem:[%s1 + $0x30] sm:$0xff]
        %v452 = vld [vmem:[%s1 + $0x38] sm:$0xff]
        %v453 = vld [vmem:[%s394] sm:$0xff]
        %v454 = vld [vmem:[%s2] sm:$0xff]
        %v455 = vld [vmem:[%s2 + $0x8] sm:$0xff]
        %v456 = vld [vmem:[%s2 + $0x10] sm:$0xff]
        %v457 = vld [vmem:[%s2 + $0x18] sm:$0xff]
        %v458 = vld [vmem:[%s2 + $0x20] sm:$0xff]
        %v459 = vld [vmem:[%s2 + $0x28] sm:$0xff]
        %v460 = vld [vmem:[%s2 + $0x30] sm:$0xff]
        %v461 = vld [vmem:[%s2 + $0x38] sm:$0xff]
        %463 = vset.pattern.permute.xlu0 0
        %464 = vperm.xlu0 %463, %v454
        %v465 = vpop.permute.xlu0 %464
        %468 = vset.pattern.permute.xlu0 0
        %469 = vperm.xlu0 %468, %v455
        %v470 = vpop.permute.xlu0 %469
        %473 = vset.pattern.permute.xlu0 0
        %474 = vperm.xlu0 %473, %v456
        %v475 = vpop.permute.xlu0 %474
        %478 = vset.pattern.permute.xlu0 0
        %479 = vperm.xlu0 %478, %v457
        %v480 = vpop.permute.xlu0 %479
        %483 = vset.pattern.permute.xlu0 0
        %484 = vperm.xlu0 %483, %v458
        %v485 = vpop.permute.xlu0 %484
        %488 = vset.pattern.permute.xlu0 0
        %489 = vperm.xlu0 %488, %v459
        %v490 = vpop.permute.xlu0 %489
        %493 = vset.pattern.permute.xlu0 0
        %494 = vperm.xlu0 %493, %v460
        %v495 = vpop.permute.xlu0 %494
        %498 = vset.pattern.permute.xlu0 0
        %499 = vperm.xlu0 %498, %v461
        %v500 = vpop.permute.xlu0 %499
        %vm502 = vcmask 64512
        %v504 = vsel %vm502, %v445, 0
        %v507 = vsel %vm502, %v446, 0
        %v510 = vsel %vm502, %v447, 0
        %v513 = vsel %vm502, %v448, 0
        %v516 = vsel %vm502, %v449, 0
        %v519 = vsel %vm502, %v450, 0
        %v522 = vsel %vm502, %v451, 0
        %v525 = vsel %vm502, %v452, 0
        %527 = vmatprep.subr.mxu0 0.0
        %528 = vmatpush1.msra.mxu0 %v453
        %529 = vmatprep.subr.mxu0 0.0
        %530 = vmatpush1.msra.mxu0 0.0
        %531 = vmatprep.subr.mxu0 0.0
        %532 = vmatpush1.msra.mxu0 0.0
        %533 = vmatprep.subr.mxu0 0.0
        %534 = vmatpush1.msra.mxu0 0.0
        %535 = vmatprep.subr.mxu0 0.0
        %536 = vmatpush1.msra.mxu0 0.0
        %537 = vmatprep.subr.mxu0 0.0
        %538 = vmatpush1.msra.mxu0 0.0
        %539 = vmatprep.subr.mxu0 0.0
        %540 = vmatpush1.msra.mxu0 0.0
        %541 = vmatprep.subr.mxu0 0.0
        %542 = vmatpush1.msra.mxu0 0.0
        %543 = vmatprep.subr.mxu0 0.0
        %544 = vmatpush1.msra.mxu0 0.0
        %545 = vmatprep.subr.mxu0 0.0
        %546 = vmatpush1.msra.mxu0 0.0
        %547 = vmatprep.subr.mxu0 0.0
        %548 = vmatpush1.msra.mxu0 0.0
        %549 = vmatprep.subr.mxu0 0.0
        %550 = vmatpush1.msra.mxu0 0.0
        %551 = vmatprep.subr.mxu0 0.0
        %552 = vmatpush1.msra.mxu0 0.0
        %553 = vmatprep.subr.mxu0 0.0
        %554 = vmatpush1.msra.mxu0 0.0
        %555 = vmatprep.subr.mxu0 0.0
        %556 = vmatpush1.msra.mxu0 0.0
        %557 = vmatprep.subr.mxu0 0.0
        %558 = vmatpush1.msra.mxu0 0.0
        %559 = vmatprep.subr.mxu0 0.0
        %560 = vmatpush1.msra.mxu0 0.0
        %561 = vmatprep.subr.mxu0 0.0
        %562 = vmatpush1.msra.mxu0 0.0
        %563 = vmatprep.subr.mxu0 0.0
        %564 = vmatpush1.msra.mxu0 0.0
        %565 = vmatprep.subr.mxu0 0.0
        %566 = vmatpush1.msra.mxu0 0.0
        %567 = vmatprep.subr.mxu0 0.0
        %568 = vmatpush1.msra.mxu0 0.0
        %569 = vmatprep.subr.mxu0 0.0
        %570 = vmatpush1.msra.mxu0 0.0
        %571 = vmatprep.subr.mxu0 0.0
        %572 = vmatpush1.msra.mxu0 0.0
        %573 = vmatprep.subr.mxu0 0.0
        %574 = vmatpush1.msra.mxu0 0.0
        %575 = vmatprep.subr.mxu0 0.0
        %576 = vmatpush1.msra.mxu0 0.0
        %577 = vmatprep.subr.mxu0 0.0
        %578 = vmatpush1.msra.mxu0 0.0
        %579 = vmatprep.subr.mxu0 0.0
        %580 = vmatpush1.msra.mxu0 0.0
        %581 = vmatprep.subr.mxu0 0.0
        %582 = vmatpush1.msra.mxu0 0.0
        %583 = vmatprep.subr.mxu0 0.0
        %584 = vmatpush1.msra.mxu0 0.0
        %585 = vmatprep.subr.mxu0 0.0
        %586 = vmatpush1.msra.mxu0 0.0
        %587 = vmatprep.subr.mxu0 0.0
        %588 = vmatpush1.msra.mxu0 0.0
        %589 = vmatprep.subr.mxu0 0.0
        %590 = vmatpush1.msra.mxu0 0.0
        %591 = vmatprep.mubr.f32.mxu0 0.0
        %592 = vmatmul.mubr.f32.gmra.mrb[0].mxu0 %v504
        %v593 = vpop.f32.mrb[0].mxu0
        %v594 = vadd.f32 %v465, %v593
        %v595 = vpop.f32.mrb[0].mxu0
        %596 = vmatprep.mubr.f32.mxu0 0.0
        %597 = vmatmul.mubr.f32.gmra.mrb[0].mxu0 %v507
        %v598 = vpop.f32.mrb[0].mxu0
        %v599 = vadd.f32 %v470, %v598
        %v600 = vpop.f32.mrb[0].mxu0
        %601 = vmatprep.mubr.f32.mxu0 0.0
        %602 = vmatmul.mubr.f32.gmra.mrb[0].mxu0 %v510
        %v603 = vpop.f32.mrb[0].mxu0
        %v604 = vadd.f32 %v475, %v603
        %v605 = vpop.f32.mrb[0].mxu0
        %606 = vmatprep.mubr.f32.mxu0 0.0
        %607 = vmatmul.mubr.f32.gmra.mrb[0].mxu0 %v513
        %v608 = vpop.f32.mrb[0].mxu0
        %v609 = vadd.f32 %v480, %v608
        %v610 = vpop.f32.mrb[0].mxu0
        %611 = vmatprep.mubr.f32.mxu0 0.0
        %612 = vmatmul.mubr.f32.gmra.mrb[0].mxu0 %v516
        %v613 = vpop.f32.mrb[0].mxu0
        %v614 = vadd.f32 %v485, %v613
        %v615 = vpop.f32.mrb[0].mxu0
        %616 = vmatprep.mubr.f32.mxu0 0.0
        %617 = vmatmul.mubr.f32.gmra.mrb[0].mxu0 %v519
        %v618 = vpop.f32.mrb[0].mxu0
        %v619 = vadd.f32 %v490, %v618
        %v620 = vpop.f32.mrb[0].mxu0
        %621 = vmatprep.mubr.f32.mxu0 0.0
        %622 = vmatmul.mubr.f32.gmra.mrb[0].mxu0 %v522
        %v623 = vpop.f32.mrb[0].mxu0
        %v624 = vadd.f32 %v495, %v623
        %v625 = vpop.f32.mrb[0].mxu0
        %626 = vmatprep.mubr.f32.mxu0 0.0
        %627 = vmatmul.mubr.f32.gmra.mrb[0].mxu0 %v525
        %v628 = vpop.f32.mrb[0].mxu0
        %v629 = vadd.f32 %v500, %v628
        %v630 = vpop.f32.mrb[0].mxu0
        %631 = vdwg.mxu0
        %v632 = vmax.f32 %v594, 0.0
        %v633 = vmax.f32 %v599, 0.0
        %v634 = vmax.f32 %v604, 0.0
        %v635 = vmax.f32 %v609, 0.0
        %v636 = vmax.f32 %v614, 0.0
        %v637 = vmax.f32 %v619, 0.0
        %v638 = vmax.f32 %v624, 0.0
        %v639 = vmax.f32 %v629, 0.0
        // Predicated region
        $region73: #{tpu_custom_call.1} parent=63 // pred_check
          %p640 = pneg %p395
        $region74: #{tpu_custom_call.1} parent=63 // pred_check_branch
          %642 = sbr.rel (%p640) target = $region76
        $region75: #{tpu_custom_call.1} parent=63 // pred_region
          %v643 = vsel %vm444, 1, 0
          %vm644 = vcmp.eq.s32.totalorder %v643, 1
          %v645 = vsel %vm644, %v632, 0.0
          %v646 = vsel %vm644, %v633, 0.0
          %v647 = vsel %vm644, %v634, 0.0
          %v648 = vsel %vm644, %v635, 0.0
          %v649 = vsel %vm644, %v636, 0.0
          %v650 = vsel %vm644, %v637, 0.0
          %v651 = vsel %vm644, %v638, 0.0
          %v652 = vsel %vm644, %v639, 0.0
          %v653 = vld [vmem:[#allocation2] sm:$0xff]
          %v654 = vld [vmem:[#allocation2 + $0x8] sm:$0xff]
          %v655 = vld [vmem:[#allocation2 + $0x10] sm:$0xff]
          %v656 = vld [vmem:[#allocation2 + $0x18] sm:$0xff]
          %v657 = vld [vmem:[#allocation2 + $0x20] sm:$0xff]
          %v658 = vld [vmem:[#allocation2 + $0x28] sm:$0xff]
          %v659 = vld [vmem:[#allocation2 + $0x30] sm:$0xff]
          %v660 = vld [vmem:[#allocation2 + $0x38] sm:$0xff]
          %661 = vadd.xlane.f32.xlu0 %v645
          %v662 = vpop.xlane.xlu0 %661
          %663 = vadd.xlane.f32.xlu0 %v646
          %v664 = vpop.xlane.xlu0 %663
          %665 = vadd.xlane.f32.xlu0 %v647
          %v666 = vpop.xlane.xlu0 %665
          %667 = vadd.xlane.f32.xlu0 %v648
          %v668 = vpop.xlane.xlu0 %667
          %669 = vadd.xlane.f32.xlu0 %v649
          %v670 = vpop.xlane.xlu0 %669
          %671 = vadd.xlane.f32.xlu0 %v650
          %v672 = vpop.xlane.xlu0 %671
          %673 = vadd.xlane.f32.xlu0 %v651
          %v674 = vpop.xlane.xlu0 %673
          %675 = vadd.xlane.f32.xlu0 %v652
          %v676 = vpop.xlane.xlu0 %675
          %v677 = vadd.f32 %v653, %v662
          %v678 = vadd.f32 %v654, %v664
          %v679 = vadd.f32 %v655, %v666
          %v680 = vadd.f32 %v656, %v668
          %v681 = vadd.f32 %v657, %v670
          %v682 = vadd.f32 %v658, %v672
          %v683 = vadd.f32 %v659, %v674
          %v684 = vadd.f32 %v660, %v676
          %vm685 = vcmask 7168
          %686 = vst.msk [vmem:[#allocation2] sm:$0xff] %vm685, %v677
          %687 = vst.msk [vmem:[#allocation2 + $0x8] sm:$0xff] %vm685, %v678
          %688 = vst.msk [vmem:[#allocation2 + $0x10] sm:$0xff] %vm685, %v679
          %689 = vst.msk [vmem:[#allocation2 + $0x18] sm:$0xff] %vm685, %v680
          %690 = vst.msk [vmem:[#allocation2 + $0x20] sm:$0xff] %vm685, %v681
          %691 = vst.msk [vmem:[#allocation2 + $0x28] sm:$0xff] %vm685, %v682
          %692 = vst.msk [vmem:[#allocation2 + $0x30] sm:$0xff] %vm685, %v683
          %693 = vst.msk [vmem:[#allocation2 + $0x38] sm:$0xff] %vm685, %v684
          %v694 = vld [vmem:[#allocation3] sm:$0xff]
          %v695 = vld [vmem:[#allocation3 + $0x8] sm:$0xff]
          %v696 = vld [vmem:[#allocation3 + $0x10] sm:$0xff]
          %v697 = vld [vmem:[#allocation3 + $0x18] sm:$0xff]
          %v698 = vld [vmem:[#allocation3 + $0x20] sm:$0xff]
          %v699 = vld [vmem:[#allocation3 + $0x28] sm:$0xff]
          %v700 = vld [vmem:[#allocation3 + $0x30] sm:$0xff]
          %v701 = vld [vmem:[#allocation3 + $0x38] sm:$0xff]
          %v702 = vmul.f32 %v645, %v645
          %v703 = vmul.f32 %v646, %v646
          %v704 = vmul.f32 %v647, %v647
          %v705 = vmul.f32 %v648, %v648
          %v706 = vmul.f32 %v649, %v649
          %v707 = vmul.f32 %v650, %v650
          %v708 = vmul.f32 %v651, %v651
          %v709 = vmul.f32 %v652, %v652
          %710 = vadd.xlane.f32.xlu0 %v702
          %v711 = vpop.xlane.xlu0 %710
          %712 = vadd.xlane.f32.xlu0 %v703
          %v713 = vpop.xlane.xlu0 %712
          %714 = vadd.xlane.f32.xlu0 %v704
          %v715 = vpop.xlane.xlu0 %714
          %716 = vadd.xlane.f32.xlu0 %v705
          %v717 = vpop.xlane.xlu0 %716
          %718 = vadd.xlane.f32.xlu0 %v706
          %v719 = vpop.xlane.xlu0 %718
          %720 = vadd.xlane.f32.xlu0 %v707
          %v721 = vpop.xlane.xlu0 %720
          %722 = vadd.xlane.f32.xlu0 %v708
          %v723 = vpop.xlane.xlu0 %722
          %724 = vadd.xlane.f32.xlu0 %v709
          %v725 = vpop.xlane.xlu0 %724
          %v726 = vadd.f32 %v694, %v711
          %v727 = vadd.f32 %v695, %v713
          %v728 = vadd.f32 %v696, %v715
          %v729 = vadd.f32 %v697, %v717
          %v730 = vadd.f32 %v698, %v719
          %v731 = vadd.f32 %v699, %v721
          %v732 = vadd.f32 %v700, %v723
          %v733 = vadd.f32 %v701, %v725
          %734 = vst.msk [vmem:[#allocation3] sm:$0xff] %vm685, %v726
          %735 = vst.msk [vmem:[#allocation3 + $0x8] sm:$0xff] %vm685, %v727
          %736 = vst.msk [vmem:[#allocation3 + $0x10] sm:$0xff] %vm685, %v728
          %737 = vst.msk [vmem:[#allocation3 + $0x18] sm:$0xff] %vm685, %v729
          %738 = vst.msk [vmem:[#allocation3 + $0x20] sm:$0xff] %vm685, %v730
          %739 = vst.msk [vmem:[#allocation3 + $0x28] sm:$0xff] %vm685, %v731
          %740 = vst.msk [vmem:[#allocation3 + $0x30] sm:$0xff] %vm685, %v732
          %741 = vst.msk [vmem:[#allocation3 + $0x38] sm:$0xff] %vm685, %v733
        $region76: #{tpu_custom_call.1} parent=63 // pred_fallthru
          _
        %p742 = scmp.ge.s32.totalorder %s31, 1
        // Predicated region
        $region77: #{tpu_custom_call.1} parent=63 // pred_check
          %p743 = pneg %p742
        $region78: #{tpu_custom_call.1} parent=63 // pred_check_branch
          %745 = sbr.rel (%p743) target = $region80
        $region79: #{tpu_custom_call.1} parent=63 // pred_region
          %v746 = vld [vmem:[#allocation2] sm:$0xff]
          %v747 = vld [vmem:[#allocation2 + $0x8] sm:$0xff]
          %v748 = vld [vmem:[#allocation2 + $0x10] sm:$0xff]
          %v749 = vld [vmem:[#allocation2 + $0x18] sm:$0xff]
          %v750 = vld [vmem:[#allocation2 + $0x20] sm:$0xff]
          %v751 = vld [vmem:[#allocation2 + $0x28] sm:$0xff]
          %v752 = vld [vmem:[#allocation2 + $0x30] sm:$0xff]
          %v753 = vld [vmem:[#allocation2 + $0x38] sm:$0xff]
          %v754 = vmul.f32 %v746, 0.005
          %v755 = vmul.f32 %v747, 0.005
          %v756 = vmul.f32 %v748, 0.005
          %v757 = vmul.f32 %v749, 0.005
          %v758 = vmul.f32 %v750, 0.005
          %v759 = vmul.f32 %v751, 0.005
          %v760 = vmul.f32 %v752, 0.005
          %v761 = vmul.f32 %v753, 0.005
          %v762 = vld [vmem:[#allocation3] sm:$0xff]
          %v763 = vld [vmem:[#allocation3 + $0x8] sm:$0xff]
          %v764 = vld [vmem:[#allocation3 + $0x10] sm:$0xff]
          %v765 = vld [vmem:[#allocation3 + $0x18] sm:$0xff]
          %v766 = vld [vmem:[#allocation3 + $0x20] sm:$0xff]
          %v767 = vld [vmem:[#allocation3 + $0x28] sm:$0xff]
          %v768 = vld [vmem:[#allocation3 + $0x30] sm:$0xff]
          %v769 = vld [vmem:[#allocation3 + $0x38] sm:$0xff]
          %v770 = vmul.f32 %v762, 0.005
          %v771 = vmul.f32 %v763, 0.005
          %v772 = vmul.f32 %v764, 0.005
          %v773 = vmul.f32 %v765, 0.005
          %v774 = vmul.f32 %v766, 0.005
          %v775 = vmul.f32 %v767, 0.005
          %v776 = vmul.f32 %v768, 0.005
          %v777 = vmul.f32 %v769, 0.005
          %v778 = vmul.f32 %v754, %v754
          %v779 = vmul.f32 %v755, %v755
          %v780 = vmul.f32 %v756, %v756
          %v781 = vmul.f32 %v757, %v757
          %v782 = vmul.f32 %v758, %v758
          %v783 = vmul.f32 %v759, %v759
          %v784 = vmul.f32 %v760, %v760
          %v785 = vmul.f32 %v761, %v761
          %v786 = vsub.f32 %v770, %v778
          %v787 = vsub.f32 %v771, %v779
          %v788 = vsub.f32 %v772, %v780
          %v789 = vsub.f32 %v773, %v781
          %v790 = vsub.f32 %v774, %v782
          %v791 = vsub.f32 %v775, %v783
          %v792 = vsub.f32 %v776, %v784
          %v793 = vsub.f32 %v777, %v785
          %v794 = vmax.f32 %v786, 0.0
          %v795 = vmax.f32 %v787, 0.0
          %v796 = vmax.f32 %v788, 0.0
          %v797 = vmax.f32 %v789, 0.0
          %v798 = vmax.f32 %v790, 0.0
          %v799 = vmax.f32 %v791, 0.0
          %v800 = vmax.f32 %v792, 0.0
          %v801 = vmax.f32 %v793, 0.0
          %v802 = vld [vmem:[%s3] sm:$0xff]
          %v803 = vld [vmem:[%s3 + $0x8] sm:$0xff]
          %v804 = vld [vmem:[%s3 + $0x10] sm:$0xff]
          %v805 = vld [vmem:[%s3 + $0x18] sm:$0xff]
          %v806 = vld [vmem:[%s3 + $0x20] sm:$0xff]
          %v807 = vld [vmem:[%s3 + $0x28] sm:$0xff]
          %v808 = vld [vmem:[%s3 + $0x30] sm:$0xff]
          %v809 = vld [vmem:[%s3 + $0x38] sm:$0xff]
          %v810 = vadd.f32 %v794, 1e-05
          %v811 = vadd.f32 %v795, 1e-05
          %v812 = vadd.f32 %v796, 1e-05
          %v813 = vadd.f32 %v797, 1e-05
          %v814 = vadd.f32 %v798, 1e-05
          %v815 = vadd.f32 %v799, 1e-05
          %v816 = vadd.f32 %v800, 1e-05
          %v817 = vadd.f32 %v801, 1e-05
          %v818 = vrsqrt.pop %v810
          %v819 = vrsqrt.pop %v811
          %v820 = vrsqrt.pop %v812
          %v821 = vrsqrt.pop %v813
          %v822 = vrsqrt.pop %v814
          %v823 = vrsqrt.pop %v815
          %v824 = vrsqrt.pop %v816
          %v825 = vrsqrt.pop %v817
          %v826 = vmul.f32 %v802, %v818
          %v827 = vmul.f32 %v803, %v819
          %v828 = vmul.f32 %v804, %v820
          %v829 = vmul.f32 %v805, %v821
          %v830 = vmul.f32 %v806, %v822
          %v831 = vmul.f32 %v807, %v823
          %v832 = vmul.f32 %v808, %v824
          %v833 = vmul.f32 %v809, %v825
          %v834 = vld [vmem:[%s4] sm:$0xff]
          %v835 = vld [vmem:[%s4 + $0x8] sm:$0xff]
          %v836 = vld [vmem:[%s4 + $0x10] sm:$0xff]
          %v837 = vld [vmem:[%s4 + $0x18] sm:$0xff]
          %v838 = vld [vmem:[%s4 + $0x20] sm:$0xff]
          %v839 = vld [vmem:[%s4 + $0x28] sm:$0xff]
          %v840 = vld [vmem:[%s4 + $0x30] sm:$0xff]
          %v841 = vld [vmem:[%s4 + $0x38] sm:$0xff]
          %v842 = vmul.f32 %v754, %v826
          %v843 = vmul.f32 %v755, %v827
          %v844 = vmul.f32 %v756, %v828
          %v845 = vmul.f32 %v757, %v829
          %v846 = vmul.f32 %v758, %v830
          %v847 = vmul.f32 %v759, %v831
          %v848 = vmul.f32 %v760, %v832
          %v849 = vmul.f32 %v761, %v833
          %v850 = vsub.f32 %v834, %v842
          %v851 = vsub.f32 %v835, %v843
          %v852 = vsub.f32 %v836, %v844
          %v853 = vsub.f32 %v837, %v845
          %v854 = vsub.f32 %v838, %v846
          %v855 = vsub.f32 %v839, %v847
          %v856 = vsub.f32 %v840, %v848
          %v857 = vsub.f32 %v841, %v849
          %859 = vset.pattern.permute.xlu0 0
          %860 = vperm.xlu0 %859, %v826
          %v861 = vpop.permute.xlu0 %860
          %864 = vset.pattern.permute.xlu0 0
          %865 = vperm.xlu0 %864, %v827
          %v866 = vpop.permute.xlu0 %865
          %869 = vset.pattern.permute.xlu0 0
          %870 = vperm.xlu0 %869, %v828
          %v871 = vpop.permute.xlu0 %870
          %874 = vset.pattern.permute.xlu0 0
          %875 = vperm.xlu0 %874, %v829
          %v876 = vpop.permute.xlu0 %875
          %879 = vset.pattern.permute.xlu0 0
          %880 = vperm.xlu0 %879, %v830
          %v881 = vpop.permute.xlu0 %880
          %884 = vset.pattern.permute.xlu0 0
          %885 = vperm.xlu0 %884, %v831
          %v886 = vpop.permute.xlu0 %885
          %889 = vset.pattern.permute.xlu0 0
          %890 = vperm.xlu0 %889, %v832
          %v891 = vpop.permute.xlu0 %890
          %894 = vset.pattern.permute.xlu0 0
          %895 = vperm.xlu0 %894, %v833
          %v896 = vpop.permute.xlu0 %895
          %v898 = vmul.f32 %v632, %v861
          %v899 = vmul.f32 %v633, %v866
          %v900 = vmul.f32 %v634, %v871
          %v901 = vmul.f32 %v635, %v876
          %v902 = vmul.f32 %v636, %v881
          %v903 = vmul.f32 %v637, %v886
          %v904 = vmul.f32 %v638, %v891
          %v905 = vmul.f32 %v639, %v896
          %907 = vset.pattern.permute.xlu0 0
          %908 = vperm.xlu0 %907, %v850
          %v909 = vpop.permute.xlu0 %908
          %912 = vset.pattern.permute.xlu0 0
          %913 = vperm.xlu0 %912, %v851
          %v914 = vpop.permute.xlu0 %913
          %917 = vset.pattern.permute.xlu0 0
          %918 = vperm.xlu0 %917, %v852
          %v919 = vpop.permute.xlu0 %918
          %922 = vset.pattern.permute.xlu0 0
          %923 = vperm.xlu0 %922, %v853
          %v924 = vpop.permute.xlu0 %923
          %927 = vset.pattern.permute.xlu0 0
          %928 = vperm.xlu0 %927, %v854
          %v929 = vpop.permute.xlu0 %928
          %932 = vset.pattern.permute.xlu0 0
          %933 = vperm.xlu0 %932, %v855
          %v934 = vpop.permute.xlu0 %933
          %937 = vset.pattern.permute.xlu0 0
          %938 = vperm.xlu0 %937, %v856
          %v939 = vpop.permute.xlu0 %938
          %942 = vset.pattern.permute.xlu0 0
          %943 = vperm.xlu0 %942, %v857
          %v944 = vpop.permute.xlu0 %943
          %v946 = vadd.f32 %v898, %v909
          %v947 = vadd.f32 %v899, %v914
          %v948 = vadd.f32 %v900, %v919
          %v949 = vadd.f32 %v901, %v924
          %v950 = vadd.f32 %v902, %v929
          %v951 = vadd.f32 %v903, %v934
          %v952 = vadd.f32 %v904, %v939
          %v953 = vadd.f32 %v905, %v944
          %v954 = vld [vmem:[%s5] sm:$0xff]
          %v955 = vld [vmem:[%s5 + $0x8] sm:$0xff]
          %v956 = vld [vmem:[%s5 + $0x10] sm:$0xff]
          %v957 = vld [vmem:[%s5 + $0x18] sm:$0xff]
          %v958 = vld [vmem:[%s5 + $0x20] sm:$0xff]
          %v959 = vld [vmem:[%s5 + $0x28] sm:$0xff]
          %v960 = vld [vmem:[%s5 + $0x30] sm:$0xff]
          %v961 = vld [vmem:[%s5 + $0x38] sm:$0xff]
          %v962 = vld [vmem:[%s6] sm:$0xff]
          %v963 = vld [vmem:[%s6 + $0x8] sm:$0xff]
          %v964 = vld [vmem:[%s6 + $0x10] sm:$0xff]
          %v965 = vld [vmem:[%s6 + $0x18] sm:$0xff]
          %v966 = vld [vmem:[%s6 + $0x20] sm:$0xff]
          %v967 = vld [vmem:[%s6 + $0x28] sm:$0xff]
          %v968 = vld [vmem:[%s6 + $0x30] sm:$0xff]
          %v969 = vld [vmem:[%s6 + $0x38] sm:$0xff]
          %971 = vset.pattern.permute.xlu0 0
          %972 = vperm.xlu0 %971, %v962
          %v973 = vpop.permute.xlu0 %972
          %976 = vset.pattern.permute.xlu0 0
          %977 = vperm.xlu0 %976, %v963
          %v978 = vpop.permute.xlu0 %977
          %981 = vset.pattern.permute.xlu0 0
          %982 = vperm.xlu0 %981, %v964
          %v983 = vpop.permute.xlu0 %982
          %986 = vset.pattern.permute.xlu0 0
          %987 = vperm.xlu0 %986, %v965
          %v988 = vpop.permute.xlu0 %987
          %991 = vset.pattern.permute.xlu0 0
          %992 = vperm.xlu0 %991, %v966
          %v993 = vpop.permute.xlu0 %992
          %996 = vset.pattern.permute.xlu0 0
          %997 = vperm.xlu0 %996, %v967
          %v998 = vpop.permute.xlu0 %997
          %1001 = vset.pattern.permute.xlu0 0
          %1002 = vperm.xlu0 %1001, %v968
          %v1003 = vpop.permute.xlu0 %1002
          %1006 = vset.pattern.permute.xlu0 0
          %1007 = vperm.xlu0 %1006, %v969
          %v1008 = vpop.permute.xlu0 %1007
          %vm1010 = vcmask 523264
          %v1012 = vsel %vm1010, %v954, 0
          %v1015 = vsel %vm1010, %v955, 0
          %v1018 = vsel %vm1010, %v956, 0
          %v1021 = vsel %vm1010, %v957, 0
          %v1024 = vsel %vm1010, %v958, 0
          %v1027 = vsel %vm1010, %v959, 0
          %v1030 = vsel %vm1010, %v960, 0
          %v1033 = vsel %vm1010, %v961, 0
          %1035 = vmatprep.subr.mxu0 0.0
          %1036 = vmatpush1.msra.mxu0 %v946
          %1037 = vmatprep.subr.mxu0 0.0
          %1038 = vmatpush1.msra.mxu0 %v947
          %1039 = vmatprep.subr.mxu0 0.0
          %1040 = vmatpush1.msra.mxu0 %v948
          %1041 = vmatprep.subr.mxu0 0.0
          %1042 = vmatpush1.msra.mxu0 %v949
          %1043 = vmatprep.subr.mxu0 0.0
          %1044 = vmatpush1.msra.mxu0 %v950
          %1045 = vmatprep.subr.mxu0 0.0
          %1046 = vmatpush1.msra.mxu0 %v951
          %1047 = vmatprep.subr.mxu0 0.0
          %1048 = vmatpush1.msra.mxu0 %v952
          %1049 = vmatprep.subr.mxu0 0.0
          %1050 = vmatpush1.msra.mxu0 %v953
          %1051 = vmatprep.subr.mxu0 0.0
          %1052 = vmatpush1.msra.mxu0 0.0
          %1053 = vmatprep.subr.mxu0 0.0
          %1054 = vmatpush1.msra.mxu0 0.0
          %1055 = vmatprep.subr.mxu0 0.0
          %1056 = vmatpush1.msra.mxu0 0.0
          %1057 = vmatprep.subr.mxu0 0.0
          %1058 = vmatpush1.msra.mxu0 0.0
          %1059 = vmatprep.subr.mxu0 0.0
          %1060 = vmatpush1.msra.mxu0 0.0
          %1061 = vmatprep.subr.mxu0 0.0
          %1062 = vmatpush1.msra.mxu0 0.0
          %1063 = vmatprep.subr.mxu0 0.0
          %1064 = vmatpush1.msra.mxu0 0.0
          %1065 = vmatprep.subr.mxu0 0.0
          %1066 = vmatpush1.msra.mxu0 0.0
          %1067 = vmatprep.subr.mxu0 0.0
          %1068 = vmatpush1.msra.mxu0 0.0
          %1069 = vmatprep.subr.mxu0 0.0
          %1070 = vmatpush1.msra.mxu0 0.0
          %1071 = vmatprep.subr.mxu0 0.0
          %1072 = vmatpush1.msra.mxu0 0.0
          %1073 = vmatprep.subr.mxu0 0.0
          %1074 = vmatpush1.msra.mxu0 0.0
          %1075 = vmatprep.subr.mxu0 0.0
          %1076 = vmatpush1.msra.mxu0 0.0
          %1077 = vmatprep.subr.mxu0 0.0
          %1078 = vmatpush1.msra.mxu0 0.0
          %1079 = vmatprep.subr.mxu0 0.0
          %1080 = vmatpush1.msra.mxu0 0.0
          %1081 = vmatprep.subr.mxu0 0.0
          %1082 = vmatpush1.msra.mxu0 0.0
          %1083 = vmatprep.subr.mxu0 0.0
          %1084 = vmatpush1.msra.mxu0 0.0
          %1085 = vmatprep.subr.mxu0 0.0
          %1086 = vmatpush1.msra.mxu0 0.0
          %1087 = vmatprep.subr.mxu0 0.0
          %1088 = vmatpush1.msra.mxu0 0.0
          %1089 = vmatprep.subr.mxu0 0.0
          %1090 = vmatpush1.msra.mxu0 0.0
          %1091 = vmatprep.subr.mxu0 0.0
          %1092 = vmatpush1.msra.mxu0 0.0
          %1093 = vmatprep.subr.mxu0 0.0
          %1094 = vmatpush1.msra.mxu0 0.0
          %1095 = vmatprep.subr.mxu0 0.0
          %1096 = vmatpush1.msra.mxu0 0.0
          %1097 = vmatprep.subr.mxu0 0.0
          %1098 = vmatpush1.msra.mxu0 0.0
          %1099 = vmatprep.mubr.f32.mxu0 0.0
          %1100 = vmatmul.mubr.f32.gmra.mrb[0].mxu0 %v1012
          %v1101 = vpop.f32.mrb[0].mxu0
          %v1102 = vadd.f32 %v973, %v1101
          %v1103 = vpop.f32.mrb[0].mxu0
          %1104 = vmatprep.mubr.f32.mxu0 0.0
          %1105 = vmatmul.mubr.f32.gmra.mrb[0].mxu0 %v1015
          %v1106 = vpop.f32.mrb[0].mxu0
          %v1107 = vadd.f32 %v978, %v1106
          %v1108 = vpop.f32.mrb[0].mxu0
          %1109 = vmatprep.mubr.f32.mxu0 0.0
          %1110 = vmatmul.mubr.f32.gmra.mrb[0].mxu0 %v1018
          %v1111 = vpop.f32.mrb[0].mxu0
          %v1112 = vadd.f32 %v983, %v1111
          %v1113 = vpop.f32.mrb[0].mxu0
          %1114 = vmatprep.mubr.f32.mxu0 0.0
          %1115 = vmatmul.mubr.f32.gmra.mrb[0].mxu0 %v1021
          %v1116 = vpop.f32.mrb[0].mxu0
          %v1117 = vadd.f32 %v988, %v1116
          %v1118 = vpop.f32.mrb[0].mxu0
          %1119 = vmatprep.mubr.f32.mxu0 0.0
          %1120 = vmatmul.mubr.f32.gmra.mrb[0].mxu0 %v1024
          %v1121 = vpop.f32.mrb[0].mxu0
          %v1122 = vadd.f32 %v993, %v1121
          %v1123 = vpop.f32.mrb[0].mxu0
          %1124 = vmatprep.mubr.f32.mxu0 0.0
          %1125 = vmatmul.mubr.f32.gmra.mrb[0].mxu0 %v1027
          %v1126 = vpop.f32.mrb[0].mxu0
          %v1127 = vadd.f32 %v998, %v1126
          %v1128 = vpop.f32.mrb[0].mxu0
          %1129 = vmatprep.mubr.f32.mxu0 0.0
          %1130 = vmatmul.mubr.f32.gmra.mrb[0].mxu0 %v1030
          %v1131 = vpop.f32.mrb[0].mxu0
          %v1132 = vadd.f32 %v1003, %v1131
          %v1133 = vpop.f32.mrb[0].mxu0
          %1134 = vmatprep.mubr.f32.mxu0 0.0
          %1135 = vmatmul.mubr.f32.gmra.mrb[0].mxu0 %v1033
          %v1136 = vpop.f32.mrb[0].mxu0
          %v1137 = vadd.f32 %v1008, %v1136
          %v1138 = vpop.f32.mrb[0].mxu0
          %1139 = vdwg.mxu0
          %v1140 = vmax.f32 %v1102, 0.0
          %v1141 = vmax.f32 %v1107, 0.0
          %v1142 = vmax.f32 %v1112, 0.0
          %v1143 = vmax.f32 %v1117, 0.0
          %v1144 = vmax.f32 %v1122, 0.0
          %v1145 = vmax.f32 %v1127, 0.0
          %v1146 = vmax.f32 %v1132, 0.0
          %v1147 = vmax.f32 %v1137, 0.0
          %p1148 = scmp.eq.s32.totalorder %s31, 1
          // Predicated region
          $region81: #{tpu_custom_call.1} parent=79 // pred_check
            %p1149 = pneg %p1148
          $region82: #{tpu_custom_call.1} parent=79 // pred_check_branch
            %1151 = sbr.rel (%p1149) target = $region84
          $region83: #{tpu_custom_call.1} parent=79 // pred_region
            %v1152 = vsel %vm444, 1, 0
            %vm1153 = vcmp.eq.s32.totalorder %v1152, 1
            %v1154 = vsel %vm1153, %v1140, 0.0
            %v1155 = vsel %vm1153, %v1141, 0.0
            %v1156 = vsel %vm1153, %v1142, 0.0
            %v1157 = vsel %vm1153, %v1143, 0.0
            %v1158 = vsel %vm1153, %v1144, 0.0
            %v1159 = vsel %vm1153, %v1145, 0.0
            %v1160 = vsel %vm1153, %v1146, 0.0
            %v1161 = vsel %vm1153, %v1147, 0.0
            %v1162 = vld [vmem:[#allocation4] sm:$0xff]
            %v1163 = vld [vmem:[#allocation4 + $0x8] sm:$0xff]
            %v1164 = vld [vmem:[#allocation4 + $0x10] sm:$0xff]
            %v1165 = vld [vmem:[#allocation4 + $0x18] sm:$0xff]
            %v1166 = vld [vmem:[#allocation4 + $0x20] sm:$0xff]
            %v1167 = vld [vmem:[#allocation4 + $0x28] sm:$0xff]
            %v1168 = vld [vmem:[#allocation4 + $0x30] sm:$0xff]
            %v1169 = vld [vmem:[#allocation4 + $0x38] sm:$0xff]
            %1170 = vadd.xlane.f32.xlu0 %v1154
            %v1171 = vpop.xlane.xlu0 %1170
            %1172 = vadd.xlane.f32.xlu0 %v1155
            %v1173 = vpop.xlane.xlu0 %1172
            %1174 = vadd.xlane.f32.xlu0 %v1156
            %v1175 = vpop.xlane.xlu0 %1174
            %1176 = vadd.xlane.f32.xlu0 %v1157
            %v1177 = vpop.xlane.xlu0 %1176
            %1178 = vadd.xlane.f32.xlu0 %v1158
            %v1179 = vpop.xlane.xlu0 %1178
            %1180 = vadd.xlane.f32.xlu0 %v1159
            %v1181 = vpop.xlane.xlu0 %1180
            %1182 = vadd.xlane.f32.xlu0 %v1160
            %v1183 = vpop.xlane.xlu0 %1182
            %1184 = vadd.xlane.f32.xlu0 %v1161
            %v1185 = vpop.xlane.xlu0 %1184
            %v1186 = vadd.f32 %v1162, %v1171
            %v1187 = vadd.f32 %v1163, %v1173
            %v1188 = vadd.f32 %v1164, %v1175
            %v1189 = vadd.f32 %v1165, %v1177
            %v1190 = vadd.f32 %v1166, %v1179
            %v1191 = vadd.f32 %v1167, %v1181
            %v1192 = vadd.f32 %v1168, %v1183
            %v1193 = vadd.f32 %v1169, %v1185
            %vm1194 = vcmask 7168
            %1195 = vst.msk [vmem:[#allocation4] sm:$0xff] %vm1194, %v1186
            %1196 = vst.msk [vmem:[#allocation4 + $0x8] sm:$0xff] %vm1194, %v1187
            %1197 = vst.msk [vmem:[#allocation4 + $0x10] sm:$0xff] %vm1194, %v1188
            %1198 = vst.msk [vmem:[#allocation4 + $0x18] sm:$0xff] %vm1194, %v1189
            %1199 = vst.msk [vmem:[#allocation4 + $0x20] sm:$0xff] %vm1194, %v1190
            %1200 = vst.msk [vmem:[#allocation4 + $0x28] sm:$0xff] %vm1194, %v1191
            %1201 = vst.msk [vmem:[#allocation4 + $0x30] sm:$0xff] %vm1194, %v1192
            %1202 = vst.msk [vmem:[#allocation4 + $0x38] sm:$0xff] %vm1194, %v1193
            %v1203 = vld [vmem:[#allocation5] sm:$0xff]
            %v1204 = vld [vmem:[#allocation5 + $0x8] sm:$0xff]
            %v1205 = vld [vmem:[#allocation5 + $0x10] sm:$0xff]
            %v1206 = vld [vmem:[#allocation5 + $0x18] sm:$0xff]
            %v1207 = vld [vmem:[#allocation5 + $0x20] sm:$0xff]
            %v1208 = vld [vmem:[#allocation5 + $0x28] sm:$0xff]
            %v1209 = vld [vmem:[#allocation5 + $0x30] sm:$0xff]
            %v1210 = vld [vmem:[#allocation5 + $0x38] sm:$0xff]
            %v1211 = vmul.f32 %v1154, %v1154
            %v1212 = vmul.f32 %v1155, %v1155
            %v1213 = vmul.f32 %v1156, %v1156
            %v1214 = vmul.f32 %v1157, %v1157
            %v1215 = vmul.f32 %v1158, %v1158
            %v1216 = vmul.f32 %v1159, %v1159
            %v1217 = vmul.f32 %v1160, %v1160
            %v1218 = vmul.f32 %v1161, %v1161
            %1219 = vadd.xlane.f32.xlu0 %v1211
            %v1220 = vpop.xlane.xlu0 %1219
            %1221 = vadd.xlane.f32.xlu0 %v1212
            %v1222 = vpop.xlane.xlu0 %1221
            %1223 = vadd.xlane.f32.xlu0 %v1213
            %v1224 = vpop.xlane.xlu0 %1223
            %1225 = vadd.xlane.f32.xlu0 %v1214
            %v1226 = vpop.xlane.xlu0 %1225
            %1227 = vadd.xlane.f32.xlu0 %v1215
            %v1228 = vpop.xlane.xlu0 %1227
            %1229 = vadd.xlane.f32.xlu0 %v1216
            %v1230 = vpop.xlane.xlu0 %1229
            %1231 = vadd.xlane.f32.xlu0 %v1217
            %v1232 = vpop.xlane.xlu0 %1231
            %1233 = vadd.xlane.f32.xlu0 %v1218
            %v1234 = vpop.xlane.xlu0 %1233
            %v1235 = vadd.f32 %v1203, %v1220
            %v1236 = vadd.f32 %v1204, %v1222
            %v1237 = vadd.f32 %v1205, %v1224
            %v1238 = vadd.f32 %v1206, %v1226
            %v1239 = vadd.f32 %v1207, %v1228
            %v1240 = vadd.f32 %v1208, %v1230
            %v1241 = vadd.f32 %v1209, %v1232
            %v1242 = vadd.f32 %v1210, %v1234
            %1243 = vst.msk [vmem:[#allocation5] sm:$0xff] %vm1194, %v1235
            %1244 = vst.msk [vmem:[#allocation5 + $0x8] sm:$0xff] %vm1194, %v1236
            %1245 = vst.msk [vmem:[#allocation5 + $0x10] sm:$0xff] %vm1194, %v1237
            %1246 = vst.msk [vmem:[#allocation5 + $0x18] sm:$0xff] %vm1194, %v1238
            %1247 = vst.msk [vmem:[#allocation5 + $0x20] sm:$0xff] %vm1194, %v1239
            %1248 = vst.msk [vmem:[#allocation5 + $0x28] sm:$0xff] %vm1194, %v1240
            %1249 = vst.msk [vmem:[#allocation5 + $0x30] sm:$0xff] %vm1194, %v1241
            %1250 = vst.msk [vmem:[#allocation5 + $0x38] sm:$0xff] %vm1194, %v1242
          $region84: #{tpu_custom_call.1} parent=79 // pred_fallthru
            _
          %p1251 = scmp.eq.s32.totalorder %s31, 2
          // Predicated region
          $region85: #{tpu_custom_call.1} parent=79 // pred_check
            %p1252 = pneg %p1251
          $region86: #{tpu_custom_call.1} parent=79 // pred_check_branch
            %1254 = sbr.rel (%p1252) target = $region88
          $region87: #{tpu_custom_call.1} parent=79 // pred_region
            %v1255 = vld [vmem:[#allocation4] sm:$0xff]
            %v1256 = vld [vmem:[#allocation4 + $0x8] sm:$0xff]
            %v1257 = vld [vmem:[#allocation4 + $0x10] sm:$0xff]
            %v1258 = vld [vmem:[#allocation4 + $0x18] sm:$0xff]
            %v1259 = vld [vmem:[#allocation4 + $0x20] sm:$0xff]
            %v1260 = vld [vmem:[#allocation4 + $0x28] sm:$0xff]
            %v1261 = vld [vmem:[#allocation4 + $0x30] sm:$0xff]
            %v1262 = vld [vmem:[#allocation4 + $0x38] sm:$0xff]
            %v1263 = vmul.f32 %v1255, 0.005
            %v1264 = vmul.f32 %v1256, 0.005
            %v1265 = vmul.f32 %v1257, 0.005
            %v1266 = vmul.f32 %v1258, 0.005
            %v1267 = vmul.f32 %v1259, 0.005
            %v1268 = vmul.f32 %v1260, 0.005
            %v1269 = vmul.f32 %v1261, 0.005
            %v1270 = vmul.f32 %v1262, 0.005
            %v1271 = vld [vmem:[#allocation5] sm:$0xff]
            %v1272 = vld [vmem:[#allocation5 + $0x8] sm:$0xff]
            %v1273 = vld [vmem:[#allocation5 + $0x10] sm:$0xff]
            %v1274 = vld [vmem:[#allocation5 + $0x18] sm:$0xff]
            %v1275 = vld [vmem:[#allocation5 + $0x20] sm:$0xff]
            %v1276 = vld [vmem:[#allocation5 + $0x28] sm:$0xff]
            %v1277 = vld [vmem:[#allocation5 + $0x30] sm:$0xff]
            %v1278 = vld [vmem:[#allocation5 + $0x38] sm:$0xff]
            %v1279 = vmul.f32 %v1271, 0.005
            %v1280 = vmul.f32 %v1272, 0.005
            %v1281 = vmul.f32 %v1273, 0.005
            %v1282 = vmul.f32 %v1274, 0.005
            %v1283 = vmul.f32 %v1275, 0.005
            %v1284 = vmul.f32 %v1276, 0.005
            %v1285 = vmul.f32 %v1277, 0.005
            %v1286 = vmul.f32 %v1278, 0.005
            %v1287 = vmul.f32 %v1263, %v1263
            %v1288 = vmul.f32 %v1264, %v1264
            %v1289 = vmul.f32 %v1265, %v1265
            %v1290 = vmul.f32 %v1266, %v1266
            %v1291 = vmul.f32 %v1267, %v1267
            %v1292 = vmul.f32 %v1268, %v1268
            %v1293 = vmul.f32 %v1269, %v1269
            %v1294 = vmul.f32 %v1270, %v1270
            %v1295 = vsub.f32 %v1279, %v1287
            %v1296 = vsub.f32 %v1280, %v1288
            %v1297 = vsub.f32 %v1281, %v1289
            %v1298 = vsub.f32 %v1282, %v1290
            %v1299 = vsub.f32 %v1283, %v1291
            %v1300 = vsub.f32 %v1284, %v1292
            %v1301 = vsub.f32 %v1285, %v1293
            %v1302 = vsub.f32 %v1286, %v1294
            %v1303 = vmax.f32 %v1295, 0.0
            %v1304 = vmax.f32 %v1296, 0.0
            %v1305 = vmax.f32 %v1297, 0.0
            %v1306 = vmax.f32 %v1298, 0.0
            %v1307 = vmax.f32 %v1299, 0.0
            %v1308 = vmax.f32 %v1300, 0.0
            %v1309 = vmax.f32 %v1301, 0.0
            %v1310 = vmax.f32 %v1302, 0.0
            %v1311 = vld [vmem:[%s7] sm:$0xff]
            %v1312 = vld [vmem:[%s7 + $0x8] sm:$0xff]
            %v1313 = vld [vmem:[%s7 + $0x10] sm:$0xff]
            %v1314 = vld [vmem:[%s7 + $0x18] sm:$0xff]
            %v1315 = vld [vmem:[%s7 + $0x20] sm:$0xff]
            %v1316 = vld [vmem:[%s7 + $0x28] sm:$0xff]
            %v1317 = vld [vmem:[%s7 + $0x30] sm:$0xff]
            %v1318 = vld [vmem:[%s7 + $0x38] sm:$0xff]
            %v1319 = vadd.f32 %v1303, 1e-05
            %v1320 = vadd.f32 %v1304, 1e-05
            %v1321 = vadd.f32 %v1305, 1e-05
            %v1322 = vadd.f32 %v1306, 1e-05
            %v1323 = vadd.f32 %v1307, 1e-05
            %v1324 = vadd.f32 %v1308, 1e-05
            %v1325 = vadd.f32 %v1309, 1e-05
            %v1326 = vadd.f32 %v1310, 1e-05
            %v1327 = vrsqrt.pop %v1319
            %v1328 = vrsqrt.pop %v1320
            %v1329 = vrsqrt.pop %v1321
            %v1330 = vrsqrt.pop %v1322
            %v1331 = vrsqrt.pop %v1323
            %v1332 = vrsqrt.pop %v1324
            %v1333 = vrsqrt.pop %v1325
            %v1334 = vrsqrt.pop %v1326
            %v1335 = vmul.f32 %v1311, %v1327
            %v1336 = vmul.f32 %v1312, %v1328
            %v1337 = vmul.f32 %v1313, %v1329
            %v1338 = vmul.f32 %v1314, %v1330
            %v1339 = vmul.f32 %v1315, %v1331
            %v1340 = vmul.f32 %v1316, %v1332
            %v1341 = vmul.f32 %v1317, %v1333
            %v1342 = vmul.f32 %v1318, %v1334
            %v1343 = vld [vmem:[%s8] sm:$0xff]
            %v1344 = vld [vmem:[%s8 + $0x8] sm:$0xff]
            %v1345 = vld [vmem:[%s8 + $0x10] sm:$0xff]
            %v1346 = vld [vmem:[%s8 + $0x18] sm:$0xff]
            %v1347 = vld [vmem:[%s8 + $0x20] sm:$0xff]
            %v1348 = vld [vmem:[%s8 + $0x28] sm:$0xff]
            %v1349 = vld [vmem:[%s8 + $0x30] sm:$0xff]
            %v1350 = vld [vmem:[%s8 + $0x38] sm:$0xff]
            %v1351 = vmul.f32 %v1263, %v1335
            %v1352 = vmul.f32 %v1264, %v1336
            %v1353 = vmul.f32 %v1265, %v1337
            %v1354 = vmul.f32 %v1266, %v1338
            %v1355 = vmul.f32 %v1267, %v1339
            %v1356 = vmul.f32 %v1268, %v1340
            %v1357 = vmul.f32 %v1269, %v1341
            %v1358 = vmul.f32 %v1270, %v1342
            %v1359 = vsub.f32 %v1343, %v1351
            %v1360 = vsub.f32 %v1344, %v1352
            %v1361 = vsub.f32 %v1345, %v1353
            %v1362 = vsub.f32 %v1346, %v1354
            %v1363 = vsub.f32 %v1347, %v1355
            %v1364 = vsub.f32 %v1348, %v1356
            %v1365 = vsub.f32 %v1349, %v1357
            %v1366 = vsub.f32 %v1350, %v1358
            %1368 = vset.pattern.permute.xlu0 0
            %1369 = vperm.xlu0 %1368, %v1335
            %v1370 = vpop.permute.xlu0 %1369
            %1373 = vset.pattern.permute.xlu0 0
            %1374 = vperm.xlu0 %1373, %v1336
            %v1375 = vpop.permute.xlu0 %1374
            %1378 = vset.pattern.permute.xlu0 0
            %1379 = vperm.xlu0 %1378, %v1337
            %v1380 = vpop.permute.xlu0 %1379
            %1383 = vset.pattern.permute.xlu0 0
            %1384 = vperm.xlu0 %1383, %v1338
            %v1385 = vpop.permute.xlu0 %1384
            %1388 = vset.pattern.permute.xlu0 0
            %1389 = vperm.xlu0 %1388, %v1339
            %v1390 = vpop.permute.xlu0 %1389
            %1393 = vset.pattern.permute.xlu0 0
            %1394 = vperm.xlu0 %1393, %v1340
            %v1395 = vpop.permute.xlu0 %1394
            %1398 = vset.pattern.permute.xlu0 0
            %1399 = vperm.xlu0 %1398, %v1341
            %v1400 = vpop.permute.xlu0 %1399
            %1403 = vset.pattern.permute.xlu0 0
            %1404 = vperm.xlu0 %1403, %v1342
            %v1405 = vpop.permute.xlu0 %1404
            %v1407 = vmul.f32 %v1140, %v1370
            %v1408 = vmul.f32 %v1141, %v1375
            %v1409 = vmul.f32 %v1142, %v1380
            %v1410 = vmul.f32 %v1143, %v1385
            %v1411 = vmul.f32 %v1144, %v1390
            %v1412 = vmul.f32 %v1145, %v1395
            %v1413 = vmul.f32 %v1146, %v1400
            %v1414 = vmul.f32 %v1147, %v1405
            %1416 = vset.pattern.permute.xlu0 0
            %1417 = vperm.xlu0 %1416, %v1359
            %v1418 = vpop.permute.xlu0 %1417
            %1421 = vset.pattern.permute.xlu0 0
            %1422 = vperm.xlu0 %1421, %v1360
            %v1423 = vpop.permute.xlu0 %1422
            %1426 = vset.pattern.permute.xlu0 0
            %1427 = vperm.xlu0 %1426, %v1361
            %v1428 = vpop.permute.xlu0 %1427
            %1431 = vset.pattern.permute.xlu0 0
            %1432 = vperm.xlu0 %1431, %v1362
            %v1433 = vpop.permute.xlu0 %1432
            %1436 = vset.pattern.permute.xlu0 0
            %1437 = vperm.xlu0 %1436, %v1363
            %v1438 = vpop.permute.xlu0 %1437
            %1441 = vset.pattern.permute.xlu0 0
            %1442 = vperm.xlu0 %1441, %v1364
            %v1443 = vpop.permute.xlu0 %1442
            %1446 = vset.pattern.permute.xlu0 0
            %1447 = vperm.xlu0 %1446, %v1365
            %v1448 = vpop.permute.xlu0 %1447
            %1451 = vset.pattern.permute.xlu0 0
            %1452 = vperm.xlu0 %1451, %v1366
            %v1453 = vpop.permute.xlu0 %1452
            %v1455 = vadd.f32 %v1407, %v1418
            %v1456 = vadd.f32 %v1408, %v1423
            %v1457 = vadd.f32 %v1409, %v1428
            %v1458 = vadd.f32 %v1410, %v1433
            %v1459 = vadd.f32 %v1411, %v1438
            %v1460 = vadd.f32 %v1412, %v1443
            %v1461 = vadd.f32 %v1413, %v1448
            %v1462 = vadd.f32 %v1414, %v1453
            %v1463 = vld [vmem:[%s9] sm:$0x1]
            %v1464 = vld [vmem:[#allocation6] sm:$0x1]
            %1466 = vset.pattern.permute.xlu0 0
            %1467 = vperm.xlu0 %1466, %v1464
            %v1468 = vpop.permute.xlu0 %1467
            %v1470 = vlaneseq
            %v1471 = vshrl.u32 %v1470, 7
            %v1472 = vsub.s32 0, %v1471
            %v1473 = vrot.slane %v1468, %v1472
            %v1475 = vsel %vm1010, %v1463, 0
            %1477 = vmatprep.subr.mxu0 0.0
            %1478 = vmatpush1.msra.mxu0 %v1455
            %1479 = vmatprep.subr.mxu0 0.0
            %1480 = vmatpush1.msra.mxu0 %v1456
            %1481 = vmatprep.subr.mxu0 0.0
            %1482 = vmatpush1.msra.mxu0 %v1457
            %1483 = vmatprep.subr.mxu0 0.0
            %1484 = vmatpush1.msra.mxu0 %v1458
            %1485 = vmatprep.subr.mxu0 0.0
            %1486 = vmatpush1.msra.mxu0 %v1459
            %1487 = vmatprep.subr.mxu0 0.0
            %1488 = vmatpush1.msra.mxu0 %v1460
            %1489 = vmatprep.subr.mxu0 0.0
            %1490 = vmatpush1.msra.mxu0 %v1461
            %1491 = vmatprep.subr.mxu0 0.0
            %1492 = vmatpush1.msra.mxu0 %v1462
            %1493 = vmatprep.subr.mxu0 0.0
            %1494 = vmatpush1.msra.mxu0 0.0
            %1495 = vmatprep.subr.mxu0 0.0
            %1496 = vmatpush1.msra.mxu0 0.0
            %1497 = vmatprep.subr.mxu0 0.0
            %1498 = vmatpush1.msra.mxu0 0.0
            %1499 = vmatprep.subr.mxu0 0.0
            %1500 = vmatpush1.msra.mxu0 0.0
            %1501 = vmatprep.subr.mxu0 0.0
            %1502 = vmatpush1.msra.mxu0 0.0
            %1503 = vmatprep.subr.mxu0 0.0
            %1504 = vmatpush1.msra.mxu0 0.0
            %1505 = vmatprep.subr.mxu0 0.0
            %1506 = vmatpush1.msra.mxu0 0.0
            %1507 = vmatprep.subr.mxu0 0.0
            %1508 = vmatpush1.msra.mxu0 0.0
            %1509 = vmatprep.subr.mxu0 0.0
            %1510 = vmatpush1.msra.mxu0 0.0
            %1511 = vmatprep.subr.mxu0 0.0
            %1512 = vmatpush1.msra.mxu0 0.0
            %1513 = vmatprep.subr.mxu0 0.0
            %1514 = vmatpush1.msra.mxu0 0.0
            %1515 = vmatprep.subr.mxu0 0.0
            %1516 = vmatpush1.msra.mxu0 0.0
            %1517 = vmatprep.subr.mxu0 0.0
            %1518 = vmatpush1.msra.mxu0 0.0
            %1519 = vmatprep.subr.mxu0 0.0
            %1520 = vmatpush1.msra.mxu0 0.0
            %1521 = vmatprep.subr.mxu0 0.0
            %1522 = vmatpush1.msra.mxu0 0.0
            %1523 = vmatprep.subr.mxu0 0.0
            %1524 = vmatpush1.msra.mxu0 0.0
            %1525 = vmatprep.subr.mxu0 0.0
            %1526 = vmatpush1.msra.mxu0 0.0
            %1527 = vmatprep.subr.mxu0 0.0
            %1528 = vmatpush1.msra.mxu0 0.0
            %1529 = vmatprep.subr.mxu0 0.0
            %1530 = vmatpush1.msra.mxu0 0.0
            %1531 = vmatprep.subr.mxu0 0.0
            %1532 = vmatpush1.msra.mxu0 0.0
            %1533 = vmatprep.subr.mxu0 0.0
            %1534 = vmatpush1.msra.mxu0 0.0
            %1535 = vmatprep.subr.mxu0 0.0
            %1536 = vmatpush1.msra.mxu0 0.0
            %1537 = vmatprep.subr.mxu0 0.0
            %1538 = vmatpush1.msra.mxu0 0.0
            %1539 = vmatprep.subr.mxu0 0.0
            %1540 = vmatpush1.msra.mxu0 0.0
            %1541 = vmatprep.mubr.f32.mxu0 0.0
            %1542 = vmatmul.mubr.f32.gmra.mrb[0].mxu0 %v1475
            %v1543 = vpop.f32.mrb[0].mxu0
            %v1544 = vadd.f32 %v1473, %v1543
            %v1545 = vpop.f32.mrb[0].mxu0
            %1546 = vdwg.mxu0
            %1547 = vst [vmem:[%s390] sm:$0x1] %v1544
          $region88: #{tpu_custom_call.1} parent=79 // pred_fallthru
            _
        $region80: #{tpu_custom_call.1} parent=63 // pred_fallthru
          _
        %s1548 = sand.u32 %s283, 1
        %s1549 = scalar_lea.sflag [#allocation8], %s1548
        %s1550 = sand.u32 %s283, 1
        %s1551 = scalar_lea.vmem [#allocation7], %s1550
        // Predicated region
        $region89: #{tpu_custom_call.1} parent=63 // pred_check
          %p1552 = pneg %p293
        $region90: #{tpu_custom_call.1} parent=63 // pred_check_branch
          %1554 = sbr.rel (%p1552) target = $region92
        $region91: #{tpu_custom_call.1} parent=63 // pred_region
          %s1556 = ssub.s32 16, 16
          %1557 = vsyncadd %s1549, %s1556
          %s1558 = smul.addr %s32, 16
          %s1559 = scalar_lea.hbm %s11, %s1558
          %s1561 = sshll.u32 %s1551, 4
          %s1562 = int_to_ptr.vmem [resolvable:$true] %s1561
          %1564 = dma.vmem_to_hbm [thread:$0]  %s1562, 16, %s1559, %s1549
        $region92: #{tpu_custom_call.1} parent=63 // pred_fallthru
          _
      $region64: #{tpu_custom_call.1} parent=5 // pred_fallthru
        _
      %p1565 = scmp.le.s32.totalorder 2, %s22
      // Predicated region
      $region93: #{tpu_custom_call.1} parent=5 // pred_check
        %p1566 = pneg %p1565
      $region94: #{tpu_custom_call.1} parent=5 // pred_check_branch
        %1568 = sbr.rel (%p1566) target = $region96
      $region95: #{tpu_custom_call.1} parent=5 // pred_region
        %s1569 = ssub.s32 %s22, 2
        // Predicated region
        $region97: #{tpu_custom_call.1} parent=95 // pred_check
          %p1570 = pneg %p299
        $region98: #{tpu_custom_call.1} parent=95 // pred_check_branch
          %1572 = sbr.rel (%p1570) target = $region100
        $region99: #{tpu_custom_call.1} parent=95 // pred_region
          %s1573 = sand.u32 %s284, 1
          %s1574 = scalar_lea.sflag [#allocation8], %s1573
          %s1575 = sand.u32 %s284, 1
          %s1576 = scalar_lea.vmem [#allocation7], %s1575
          %1577 = dma.done %s1574, 16
        $region100: #{tpu_custom_call.1} parent=95 // pred_fallthru
          _
      $region96: #{tpu_custom_call.1} parent=5 // pred_fallthru
        _
    $region6: #{tpu_custom_call.1} parent=1 // loop_footer
      %s26 = sadd.s32 1, %s22
    $region7: #{tpu_custom_call.1} parent=1 // loop_footer_branch
      %21 = sbr.rel target = $region3
    $region8: #{tpu_custom_call.1} parent=1 // loop_exit
      _
    %1578 = vsyncpa [#allocation8], 1
    %s1579 = scalar_lea.sflag [#allocation8], 1
    %1580 = vsyncpa %s1579, 1

</llo_original>
